<compile_context>
chip_gen: v7x
topology: tpu7x:2x2x1
jax: 0.10.0
libtpu: 0.0.40
codegen_flags: <defaults>
</compile_context>

<pallas_src>
import jax
import jax.numpy as jnp
from jax.experimental import pallas as pl
from jax.experimental.pallas import tpu as pltpu

HIDDEN = 128          # nn.LSTMCell(hidden_size=128)
N_STEP = 11           # fc1: 128 -> 11
N_EXP = 2             # fc2: 128 -> 2
N_RSD = 1             # fc3: 128 -> 1
N_S = 1               # fc4: 128 -> 1
HEADS = N_STEP + N_EXP + N_RSD + N_S   # 15
HEADS_PAD = 128                         # lane-dense head output width


def rnn_mtfc_kernel(x_ref, mask_x_ref, mask_h_ref,
                    w_ih_ref, w_hh_ref, bias_ref,
                    w_head_ref, b_head_ref,
                    hid_ref, head_ref):
    """LSTMCell recurrence over T steps + fused, lane-dense MtFc heads.

    x_ref:       (T, n_in)  f32   input sequence (batch squeezed to 1)
    mask_x_ref:  (1, n_in)  f32   variational dropout mask on input
    mask_h_ref:  (1, H)     f32   variational dropout mask on hidden
    w_ih_ref:    (n_in, 4H) bf16  W_ih^T, gate cols [i, f, o, 2*g]
    w_hh_ref:    (H, 4H)    bf16  W_hh^T, gate cols [i, f, o, 2*g]
    bias_ref:    (1, 4H)    f32   b_ih + b_hh, same gate order / g scaling
    w_head_ref:  (H, 128)   bf16  [fc1|fc2|fc3|fc4]^T zero-padded to 128 lanes
    b_head_ref:  (1, 128)   f32   packed head bias, zero-padded
    hid_ref:     (T, H)     out   per-step hidden states (== `y` / `output`)
    head_ref:    (T, 128)   out   packed [step | experience | rsd | s | 0-pad]
    """
    T = x_ref.shape[0]
    H = HIDDEN

    # ---- one-time prep (off the serial recurrence) -------------------------
    # Weights arrive pre-transposed, gate-permuted and pre-cast to bf16, so
    # the prologue is just the hoisted input projection:
    # one (T, n_in) @ (n_in, 4H) matmul (+ bias), kept as a register value.
    xm = (x_ref[...] * mask_x_ref[...]).astype(jnp.bfloat16)       # (T, n_in)
    gx = (jnp.dot(xm, w_ih_ref[...], preferred_element_type=jnp.float32)
          + bias_ref[...])                                          # (T, 4H) f32

    w_hh = w_hh_ref[...]        # (H, 4H) bf16; mask_h NOT folded (see loop)
    mask_h = mask_h_ref[...]    # (1, H) f32

    # ---- recurrence: fully unrolled; h/c and all hidden states in vregs ----
    h = jnp.zeros((1, H), jnp.float32)
    c = jnp.zeros((1, H), jnp.float32)
    hs = []
    for t in range(T):
        hm = (h * mask_h).astype(jnp.bfloat16)                     # 1-vreg VALU
        gates = gx[t:t + 1, :] + jnp.dot(hm, w_hh,
                                         preferred_element_type=jnp.float32)
        # One contiguous sigmoid over all 4H gate lanes (g columns were
        # pre-scaled by 2, so tanh(z_g) == 2*sigmoid(2*z_g) - 1).
        sig = jax.nn.sigmoid(gates)
        i_g = sig[:, 0:H]
        f_g = sig[:, H:2 * H]
        o_g = sig[:, 2 * H:3 * H]
        g_g = 2.0 * sig[:, 3 * H:4 * H] - 1.0
        c = f_g * c + i_g * g_g
        h = o_g * jnp.tanh(c)
        hs.append(h)

    # ---- single full-tile store of the hidden trajectory -------------------
    hid = jnp.concatenate(hs, axis=0)                               # (T, H) f32
    hid_ref[...] = hid.astype(hid_ref.dtype)

    # ---- MtFc heads: one lane-dense (T, H) @ (H, 128) matmul ----------------
    # Fed from the register value, not a re-read of hid_ref.
    head_ref[...] = (jnp.dot(hid.astype(jnp.bfloat16), w_head_ref[...],
                             preferred_element_type=jnp.float32)
                     + b_head_ref[...]).astype(head_ref.dtype)


def init_params(key, input_size):
    """Deterministic parameter init, same shapes as the PyTorch module.

    Returns kernel-ready tensors (gate-permuted to [i, f, o, g], g columns
    scaled by 2, transposed, padded, weights pre-cast to bf16) plus the raw
    PyTorch-layout f32 tensors for the pure-JAX reference check.
    """
    H = HIDDEN
    ks = jax.random.split(key, 9)
    k_lstm = 1.0 / jnp.sqrt(jnp.float32(H))

    def u(k, shape, bound):
        return jax.random.uniform(k, shape, jnp.float32, -bound, bound)

    # PyTorch layout: rows are gate blocks in order [i, f, g, o].
    w_ih = u(ks[0], (4 * H, input_size), k_lstm)
    w_hh = u(ks[1], (4 * H, H), k_lstm)
    b_ih = u(ks[2], (4 * H,), k_lstm)
    b_hh = u(ks[3], (4 * H,), k_lstm)

    w_fc1 = u(ks[4], (N_STEP, H), k_lstm)
    w_fc2 = u(ks[5], (N_EXP, H), k_lstm)
    w_fc3 = u(ks[6], (N_RSD, H), k_lstm)
    w_fc4 = u(ks[7], (N_S, H), k_lstm)
    b_fc = u(ks[8], (HEADS,), k_lstm)

    def reorder_scale(w):
        # [i, f, g, o] (PyTorch) -> [i, f, o, 2*g]; the 2x on g lets the
        # kernel run ONE sigmoid over all gates and rebuild tanh as 2*sig-1.
        i, f, g, o = jnp.split(w, 4, axis=0)
        return jnp.concatenate([i, f, o, 2.0 * g], axis=0)

    bias = reorder_scale(b_ih + b_hh).reshape(1, 4 * H)

    w_head = jnp.concatenate([w_fc1, w_fc2, w_fc3, w_fc4], axis=0)   # (15, H)
    w_head_pad = (jnp.zeros((H, HEADS_PAD), jnp.float32)
                  .at[:, :HEADS].set(w_head.T))
    b_head_pad = (jnp.zeros((1, HEADS_PAD), jnp.float32)
                  .at[:, :HEADS].set(b_fc))

    return dict(
        # MXU operands pre-cast to bf16 once (wrapper side): halves weight DMA
        # and removes in-kernel prologue casts.
        w_ih_t=reorder_scale(w_ih).T.astype(jnp.bfloat16),   # (n_in, 4H)
        w_hh_t=reorder_scale(w_hh).T.astype(jnp.bfloat16),   # (H, 4H)
        bias=bias,                                           # (1, 4H) f32
        w_head_pad=w_head_pad.astype(jnp.bfloat16),          # (H, 128)
        b_head_pad=b_head_pad,                               # (1, 128) f32
        raw=dict(w_ih=w_ih, w_hh=w_hh, b_ih=b_ih, b_hh=b_hh,
                 w_head=w_head, b_head=b_fc),
    )


def rnn_model5_forward(x, params, mask_x, mask_h):
    """x: (T, 1, input_size) float32. Returns (step, experience, rsd, s, y)."""
    T, B, n_in = x.shape
    assert B == 1, "model uses a fixed batch of 1 (h, c initialized (1, 128))"
    x2 = x.reshape(T, n_in)

    vmem = pl.BlockSpec(memory_space=pltpu.MemorySpace.VMEM)
    hid, heads_pad = pl.pallas_call(
        rnn_mtfc_kernel,
        out_shape=(jax.ShapeDtypeStruct((T, HIDDEN), jnp.float32),
                   jax.ShapeDtypeStruct((T, HEADS_PAD), jnp.float32)),
        in_specs=[vmem] * 8,
        out_specs=(vmem, vmem),
    )(x2, mask_x, mask_h,
      params["w_ih_t"], params["w_hh_t"], params["bias"],
      params["w_head_pad"], params["b_head_pad"])

    heads = heads_pad[:, :HEADS]
    step = heads[:, 0:N_STEP]
    experience = heads[:, N_STEP:N_STEP + N_EXP]
    rsd = heads[:, N_STEP + N_EXP:N_STEP + N_EXP + N_RSD]
    s = heads[:, N_STEP + N_EXP + N_RSD:]
    y = hid
    return step, experience, rsd, s, y


def reference_forward(x, raw, mask_x, mask_h):
    """Pure-JAX f32 reference with PyTorch LSTMCell semantics (gate order i,f,g,o)."""
    T = x.shape[0]
    H = HIDDEN
    h = jnp.zeros((1, H), jnp.float32)
    c = jnp.zeros((1, H), jnp.float32)
    outs = []
    for t in range(T):
        xt = x[t] * mask_x                       # (1, n_in)
        hm = h * mask_h                          # (1, H)
        gates = (xt @ raw["w_ih"].T + raw["b_ih"]
                 + hm @ raw["w_hh"].T + raw["b_hh"])
        i_g = jax.nn.sigmoid(gates[:, 0:H])
        f_g = jax.nn.sigmoid(gates[:, H:2 * H])
        g_g = jnp.tanh(gates[:, 2 * H:3 * H])
        o_g = jax.nn.sigmoid(gates[:, 3 * H:4 * H])
        c = f_g * c + i_g * g_g
        h = o_g * jnp.tanh(c)
        outs.append(h)
    y = jnp.concatenate(outs, axis=0)            # (T, H)
    heads = y @ raw["w_head"].T + raw["b_head"]
    return (heads[:, 0:N_STEP],
            heads[:, N_STEP:N_STEP + N_EXP],
            heads[:, N_STEP + N_EXP:N_STEP + N_EXP + N_RSD],
            heads[:, N_STEP + N_EXP + N_RSD:HEADS],
            y)


if __name__ == "__main__":
    key = jax.random.PRNGKey(0)
    k_param, k_x, k_mx, k_mh = jax.random.split(key, 4)

    T = 8            # sequence length
    INPUT_SIZE = 32  # model input_size

    params = init_params(k_param, INPUT_SIZE)
    x = jax.random.normal(k_x, (T, 1, INPUT_SIZE), jnp.float32)

    # Dropout(p=0.4) applied to ones in training mode: Bernoulli keep mask / 0.6.
    # Masks are resampled per forward call (variational dropout), so they are
    # passed in per call and never baked into the cached weights.
    keep = 0.6
    mask_x = jax.random.bernoulli(k_mx, keep, (1, INPUT_SIZE)).astype(jnp.float32) / keep
    mask_h = jax.random.bernoulli(k_mh, keep, (1, HIDDEN)).astype(jnp.float32) / keep

    step, experience, rsd, s, y = rnn_model5_forward(x, params, mask_x, mask_h)
    jax.block_until_ready((step, experience, rsd, s, y))

    assert step.shape == (T, N_STEP)
    assert experience.shape == (T, N_EXP)
    assert rsd.shape == (T, N_RSD)
    assert s.shape == (T, N_S)
    assert y.shape == (T, HIDDEN)

    # Correctness vs. pure-JAX f32 reference (bf16 MXU operands -> ~1e-2 error
    # expected at T=8; 3e-2 tolerance still catches gate-permute / mask bugs).
    ref = reference_forward(x, params["raw"], mask_x, mask_h)
    for got, want in zip((step, experience, rsd, s, y), ref):
        err = float(jnp.max(jnp.abs(got - want)))
        assert err < 3e-2, f"max abs err {err}"

    print("KERNEL_OK")
</pallas_src>

<mosaic_0001>
module attributes {stable_mosaic.version = 11 : i64} {
  func.func @rnn_mtfc_kernel(%arg0: memref<8x32xf32, #tpu.memory_space<vmem>>, %arg1: memref<1x32xf32, #tpu.memory_space<vmem>>, %arg2: memref<1x128xf32, #tpu.memory_space<vmem>>, %arg3: memref<32x512xbf16, #tpu.memory_space<vmem>>, %arg4: memref<128x512xbf16, #tpu.memory_space<vmem>>, %arg5: memref<1x512xf32, #tpu.memory_space<vmem>>, %arg6: memref<128x128xbf16, #tpu.memory_space<vmem>>, %arg7: memref<1x128xf32, #tpu.memory_space<vmem>>, %arg8: memref<8x128xf32, #tpu.memory_space<vmem>>, %arg9: memref<8x128xf32, #tpu.memory_space<vmem>>) attributes {dimension_semantics = [], scalar_prefetch = 0 : i64, scratch_operands = 0 : i64, tpu.core_type = #tpu.core_type<tc>} {
    %c0 = arith.constant 0 : index
    %c0_0 = arith.constant 0 : index
    %0 = vector.load %arg0[%c0, %c0_0] : memref<8x32xf32, #tpu.memory_space<vmem>>, vector<8x32xf32>
    %c0_1 = arith.constant 0 : index
    %c0_2 = arith.constant 0 : index
    %1 = vector.load %arg1[%c0_1, %c0_2] : memref<1x32xf32, #tpu.memory_space<vmem>>, vector<1x32xf32>
    %2 = vector.broadcast %1 : vector<1x32xf32> to vector<8x32xf32>
    %3 = arith.mulf %0, %2 : vector<8x32xf32>
    %4 = arith.truncf %3 : vector<8x32xf32> to vector<8x32xbf16>
    %c0_3 = arith.constant 0 : index
    %c0_4 = arith.constant 0 : index
    %5 = vector.load %arg3[%c0_3, %c0_4] : memref<32x512xbf16, #tpu.memory_space<vmem>>, vector<32x512xbf16>
    %cst = arith.constant dense<0.000000e+00> : vector<8x512xf32>
    %6 = tpu.matmul %4, %5, %cst {dimension_numbers = #tpu.dot_dimension_numbers<[1], [0], [0], [1], [0, 0, 1, 1], [], []>} : vector<8x32xbf16>, vector<32x512xbf16>, vector<8x512xf32> -> vector<8x512xf32>
    %c0_5 = arith.constant 0 : index
    %c0_6 = arith.constant 0 : index
    %7 = vector.load %arg5[%c0_5, %c0_6] : memref<1x512xf32, #tpu.memory_space<vmem>>, vector<1x512xf32>
    %8 = vector.broadcast %7 : vector<1x512xf32> to vector<8x512xf32>
    %9 = arith.addf %6, %8 : vector<8x512xf32>
    %c0_7 = arith.constant 0 : index
    %c0_8 = arith.constant 0 : index
    %10 = vector.load %arg4[%c0_7, %c0_8] : memref<128x512xbf16, #tpu.memory_space<vmem>>, vector<128x512xbf16>
    %c0_9 = arith.constant 0 : index
    %c0_10 = arith.constant 0 : index
    %11 = vector.load %arg2[%c0_9, %c0_10] : memref<1x128xf32, #tpu.memory_space<vmem>>, vector<1x128xf32>
    %cst_11 = arith.constant 0.000000e+00 : f32
    %12 = vector.broadcast %cst_11 : f32 to vector<1x128xf32>
    %cst_12 = arith.constant 0.000000e+00 : f32
    %13 = vector.broadcast %cst_12 : f32 to vector<1x128xf32>
    %14 = arith.mulf %12, %11 : vector<1x128xf32>
    %15 = arith.truncf %14 : vector<1x128xf32> to vector<1x128xbf16>
    %16 = vector.extract_strided_slice %9 {offsets = [0, 0], sizes = [1, 512], strides = [1, 1]} : vector<8x512xf32> to vector<1x512xf32>
    %cst_13 = arith.constant dense<0.000000e+00> : vector<1x512xf32>
    %17 = tpu.matmul %15, %10, %cst_13 {dimension_numbers = #tpu.dot_dimension_numbers<[1], [0], [0], [1], [0, 0, 1, 1], [], []>} : vector<1x128xbf16>, vector<128x512xbf16>, vector<1x512xf32> -> vector<1x512xf32>
    %18 = arith.addf %16, %17 : vector<1x512xf32>
    %19 = arith.negf %18 : vector<1x512xf32>
    %20 = math.exp %19 : vector<1x512xf32>
    %cst_14 = arith.constant 1.000000e+00 : f32
    %21 = vector.broadcast %cst_14 : f32 to vector<1x512xf32>
    %22 = arith.addf %21, %20 : vector<1x512xf32>
    %23 = arith.divf %21, %22 : vector<1x512xf32>
    %24 = vector.extract_strided_slice %23 {offsets = [0, 0], sizes = [1, 128], strides = [1, 1]} : vector<1x512xf32> to vector<1x128xf32>
    %25 = vector.extract_strided_slice %23 {offsets = [0, 128], sizes = [1, 128], strides = [1, 1]} : vector<1x512xf32> to vector<1x128xf32>
    %26 = vector.extract_strided_slice %23 {offsets = [0, 256], sizes = [1, 128], strides = [1, 1]} : vector<1x512xf32> to vector<1x128xf32>
    %27 = vector.extract_strided_slice %23 {offsets = [0, 384], sizes = [1, 128], strides = [1, 1]} : vector<1x512xf32> to vector<1x128xf32>
    %cst_15 = arith.constant 2.000000e+00 : f32
    %28 = vector.broadcast %cst_15 : f32 to vector<1x128xf32>
    %29 = arith.mulf %28, %27 : vector<1x128xf32>
    %cst_16 = arith.constant 1.000000e+00 : f32
    %30 = vector.broadcast %cst_16 : f32 to vector<1x128xf32>
    %31 = arith.subf %29, %30 : vector<1x128xf32>
    %32 = arith.mulf %25, %13 : vector<1x128xf32>
    %33 = arith.mulf %24, %31 : vector<1x128xf32>
    %34 = arith.addf %32, %33 : vector<1x128xf32>
    %35 = math.tanh %34 : vector<1x128xf32>
    %36 = arith.mulf %26, %35 : vector<1x128xf32>
    %37 = arith.mulf %36, %11 : vector<1x128xf32>
    %38 = arith.truncf %37 : vector<1x128xf32> to vector<1x128xbf16>
    %39 = vector.extract_strided_slice %9 {offsets = [1, 0], sizes = [1, 512], strides = [1, 1]} : vector<8x512xf32> to vector<1x512xf32>
    %cst_17 = arith.constant dense<0.000000e+00> : vector<1x512xf32>
    %40 = tpu.matmul %38, %10, %cst_17 {dimension_numbers = #tpu.dot_dimension_numbers<[1], [0], [0], [1], [0, 0, 1, 1], [], []>} : vector<1x128xbf16>, vector<128x512xbf16>, vector<1x512xf32> -> vector<1x512xf32>
    %41 = arith.addf %39, %40 : vector<1x512xf32>
    %42 = arith.negf %41 : vector<1x512xf32>
    %43 = math.exp %42 : vector<1x512xf32>
    %cst_18 = arith.constant 1.000000e+00 : f32
    %44 = vector.broadcast %cst_18 : f32 to vector<1x512xf32>
    %45 = arith.addf %44, %43 : vector<1x512xf32>
    %46 = arith.divf %44, %45 : vector<1x512xf32>
    %47 = vector.extract_strided_slice %46 {offsets = [0, 0], sizes = [1, 128], strides = [1, 1]} : vector<1x512xf32> to vector<1x128xf32>
    %48 = vector.extract_strided_slice %46 {offsets = [0, 128], sizes = [1, 128], strides = [1, 1]} : vector<1x512xf32> to vector<1x128xf32>
    %49 = vector.extract_strided_slice %46 {offsets = [0, 256], sizes = [1, 128], strides = [1, 1]} : vector<1x512xf32> to vector<1x128xf32>
    %50 = vector.extract_strided_slice %46 {offsets = [0, 384], sizes = [1, 128], strides = [1, 1]} : vector<1x512xf32> to vector<1x128xf32>
    %cst_19 = arith.constant 2.000000e+00 : f32
    %51 = vector.broadcast %cst_19 : f32 to vector<1x128xf32>
    %52 = arith.mulf %51, %50 : vector<1x128xf32>
    %cst_20 = arith.constant 1.000000e+00 : f32
    %53 = vector.broadcast %cst_20 : f32 to vector<1x128xf32>
    %54 = arith.subf %52, %53 : vector<1x128xf32>
    %55 = arith.mulf %48, %34 : vector<1x128xf32>
    %56 = arith.mulf %47, %54 : vector<1x128xf32>
    %57 = arith.addf %55, %56 : vector<1x128xf32>
    %58 = math.tanh %57 : vector<1x128xf32>
    %59 = arith.mulf %49, %58 : vector<1x128xf32>
    %60 = arith.mulf %59, %11 : vector<1x128xf32>
    %61 = arith.truncf %60 : vector<1x128xf32> to vector<1x128xbf16>
    %62 = vector.extract_strided_slice %9 {offsets = [2, 0], sizes = [1, 512], strides = [1, 1]} : vector<8x512xf32> to vector<1x512xf32>
    %cst_21 = arith.constant dense<0.000000e+00> : vector<1x512xf32>
    %63 = tpu.matmul %61, %10, %cst_21 {dimension_numbers = #tpu.dot_dimension_numbers<[1], [0], [0], [1], [0, 0, 1, 1], [], []>} : vector<1x128xbf16>, vector<128x512xbf16>, vector<1x512xf32> -> vector<1x512xf32>
    %64 = arith.addf %62, %63 : vector<1x512xf32>
    %65 = arith.negf %64 : vector<1x512xf32>
    %66 = math.exp %65 : vector<1x512xf32>
    %cst_22 = arith.constant 1.000000e+00 : f32
    %67 = vector.broadcast %cst_22 : f32 to vector<1x512xf32>
    %68 = arith.addf %67, %66 : vector<1x512xf32>
    %69 = arith.divf %67, %68 : vector<1x512xf32>
    %70 = vector.extract_strided_slice %69 {offsets = [0, 0], sizes = [1, 128], strides = [1, 1]} : vector<1x512xf32> to vector<1x128xf32>
    %71 = vector.extract_strided_slice %69 {offsets = [0, 128], sizes = [1, 128], strides = [1, 1]} : vector<1x512xf32> to vector<1x128xf32>
    %72 = vector.extract_strided_slice %69 {offsets = [0, 256], sizes = [1, 128], strides = [1, 1]} : vector<1x512xf32> to vector<1x128xf32>
    %73 = vector.extract_strided_slice %69 {offsets = [0, 384], sizes = [1, 128], strides = [1, 1]} : vector<1x512xf32> to vector<1x128xf32>
    %cst_23 = arith.constant 2.000000e+00 : f32
    %74 = vector.broadcast %cst_23 : f32 to vector<1x128xf32>
    %75 = arith.mulf %74, %73 : vector<1x128xf32>
    %cst_24 = arith.constant 1.000000e+00 : f32
    %76 = vector.broadcast %cst_24 : f32 to vector<1x128xf32>
    %77 = arith.subf %75, %76 : vector<1x128xf32>
    %78 = arith.mulf %71, %57 : vector<1x128xf32>
    %79 = arith.mulf %70, %77 : vector<1x128xf32>
    %80 = arith.addf %78, %79 : vector<1x128xf32>
    %81 = math.tanh %80 : vector<1x128xf32>
    %82 = arith.mulf %72, %81 : vector<1x128xf32>
    %83 = arith.mulf %82, %11 : vector<1x128xf32>
    %84 = arith.truncf %83 : vector<1x128xf32> to vector<1x128xbf16>
    %85 = vector.extract_strided_slice %9 {offsets = [3, 0], sizes = [1, 512], strides = [1, 1]} : vector<8x512xf32> to vector<1x512xf32>
    %cst_25 = arith.constant dense<0.000000e+00> : vector<1x512xf32>
    %86 = tpu.matmul %84, %10, %cst_25 {dimension_numbers = #tpu.dot_dimension_numbers<[1], [0], [0], [1], [0, 0, 1, 1], [], []>} : vector<1x128xbf16>, vector<128x512xbf16>, vector<1x512xf32> -> vector<1x512xf32>
    %87 = arith.addf %85, %86 : vector<1x512xf32>
    %88 = arith.negf %87 : vector<1x512xf32>
    %89 = math.exp %88 : vector<1x512xf32>
    %cst_26 = arith.constant 1.000000e+00 : f32
    %90 = vector.broadcast %cst_26 : f32 to vector<1x512xf32>
    %91 = arith.addf %90, %89 : vector<1x512xf32>
    %92 = arith.divf %90, %91 : vector<1x512xf32>
    %93 = vector.extract_strided_slice %92 {offsets = [0, 0], sizes = [1, 128], strides = [1, 1]} : vector<1x512xf32> to vector<1x128xf32>
    %94 = vector.extract_strided_slice %92 {offsets = [0, 128], sizes = [1, 128], strides = [1, 1]} : vector<1x512xf32> to vector<1x128xf32>
    %95 = vector.extract_strided_slice %92 {offsets = [0, 256], sizes = [1, 128], strides = [1, 1]} : vector<1x512xf32> to vector<1x128xf32>
    %96 = vector.extract_strided_slice %92 {offsets = [0, 384], sizes = [1, 128], strides = [1, 1]} : vector<1x512xf32> to vector<1x128xf32>
    %cst_27 = arith.constant 2.000000e+00 : f32
    %97 = vector.broadcast %cst_27 : f32 to vector<1x128xf32>
    %98 = arith.mulf %97, %96 : vector<1x128xf32>
    %cst_28 = arith.constant 1.000000e+00 : f32
    %99 = vector.broadcast %cst_28 : f32 to vector<1x128xf32>
    %100 = arith.subf %98, %99 : vector<1x128xf32>
    %101 = arith.mulf %94, %80 : vector<1x128xf32>
    %102 = arith.mulf %93, %100 : vector<1x128xf32>
    %103 = arith.addf %101, %102 : vector<1x128xf32>
    %104 = math.tanh %103 : vector<1x128xf32>
    %105 = arith.mulf %95, %104 : vector<1x128xf32>
    %106 = arith.mulf %105, %11 : vector<1x128xf32>
    %107 = arith.truncf %106 : vector<1x128xf32> to vector<1x128xbf16>
    %108 = vector.extract_strided_slice %9 {offsets = [4, 0], sizes = [1, 512], strides = [1, 1]} : vector<8x512xf32> to vector<1x512xf32>
    %cst_29 = arith.constant dense<0.000000e+00> : vector<1x512xf32>
    %109 = tpu.matmul %107, %10, %cst_29 {dimension_numbers = #tpu.dot_dimension_numbers<[1], [0], [0], [1], [0, 0, 1, 1], [], []>} : vector<1x128xbf16>, vector<128x512xbf16>, vector<1x512xf32> -> vector<1x512xf32>
    %110 = arith.addf %108, %109 : vector<1x512xf32>
    %111 = arith.negf %110 : vector<1x512xf32>
    %112 = math.exp %111 : vector<1x512xf32>
    %cst_30 = arith.constant 1.000000e+00 : f32
    %113 = vector.broadcast %cst_30 : f32 to vector<1x512xf32>
    %114 = arith.addf %113, %112 : vector<1x512xf32>
    %115 = arith.divf %113, %114 : vector<1x512xf32>
    %116 = vector.extract_strided_slice %115 {offsets = [0, 0], sizes = [1, 128], strides = [1, 1]} : vector<1x512xf32> to vector<1x128xf32>
    %117 = vector.extract_strided_slice %115 {offsets = [0, 128], sizes = [1, 128], strides = [1, 1]} : vector<1x512xf32> to vector<1x128xf32>
    %118 = vector.extract_strided_slice %115 {offsets = [0, 256], sizes = [1, 128], strides = [1, 1]} : vector<1x512xf32> to vector<1x128xf32>
    %119 = vector.extract_strided_slice %115 {offsets = [0, 384], sizes = [1, 128], strides = [1, 1]} : vector<1x512xf32> to vector<1x128xf32>
    %cst_31 = arith.constant 2.000000e+00 : f32
    %120 = vector.broadcast %cst_31 : f32 to vector<1x128xf32>
    %121 = arith.mulf %120, %119 : vector<1x128xf32>
    %cst_32 = arith.constant 1.000000e+00 : f32
    %122 = vector.broadcast %cst_32 : f32 to vector<1x128xf32>
    %123 = arith.subf %121, %122 : vector<1x128xf32>
    %124 = arith.mulf %117, %103 : vector<1x128xf32>
    %125 = arith.mulf %116, %123 : vector<1x128xf32>
    %126 = arith.addf %124, %125 : vector<1x128xf32>
    %127 = math.tanh %126 : vector<1x128xf32>
    %128 = arith.mulf %118, %127 : vector<1x128xf32>
    %129 = arith.mulf %128, %11 : vector<1x128xf32>
    %130 = arith.truncf %129 : vector<1x128xf32> to vector<1x128xbf16>
    %131 = vector.extract_strided_slice %9 {offsets = [5, 0], sizes = [1, 512], strides = [1, 1]} : vector<8x512xf32> to vector<1x512xf32>
    %cst_33 = arith.constant dense<0.000000e+00> : vector<1x512xf32>
    %132 = tpu.matmul %130, %10, %cst_33 {dimension_numbers = #tpu.dot_dimension_numbers<[1], [0], [0], [1], [0, 0, 1, 1], [], []>} : vector<1x128xbf16>, vector<128x512xbf16>, vector<1x512xf32> -> vector<1x512xf32>
    %133 = arith.addf %131, %132 : vector<1x512xf32>
    %134 = arith.negf %133 : vector<1x512xf32>
    %135 = math.exp %134 : vector<1x512xf32>
    %cst_34 = arith.constant 1.000000e+00 : f32
    %136 = vector.broadcast %cst_34 : f32 to vector<1x512xf32>
    %137 = arith.addf %136, %135 : vector<1x512xf32>
    %138 = arith.divf %136, %137 : vector<1x512xf32>
    %139 = vector.extract_strided_slice %138 {offsets = [0, 0], sizes = [1, 128], strides = [1, 1]} : vector<1x512xf32> to vector<1x128xf32>
    %140 = vector.extract_strided_slice %138 {offsets = [0, 128], sizes = [1, 128], strides = [1, 1]} : vector<1x512xf32> to vector<1x128xf32>
    %141 = vector.extract_strided_slice %138 {offsets = [0, 256], sizes = [1, 128], strides = [1, 1]} : vector<1x512xf32> to vector<1x128xf32>
    %142 = vector.extract_strided_slice %138 {offsets = [0, 384], sizes = [1, 128], strides = [1, 1]} : vector<1x512xf32> to vector<1x128xf32>
    %cst_35 = arith.constant 2.000000e+00 : f32
    %143 = vector.broadcast %cst_35 : f32 to vector<1x128xf32>
    %144 = arith.mulf %143, %142 : vector<1x128xf32>
    %cst_36 = arith.constant 1.000000e+00 : f32
    %145 = vector.broadcast %cst_36 : f32 to vector<1x128xf32>
    %146 = arith.subf %144, %145 : vector<1x128xf32>
    %147 = arith.mulf %140, %126 : vector<1x128xf32>
    %148 = arith.mulf %139, %146 : vector<1x128xf32>
    %149 = arith.addf %147, %148 : vector<1x128xf32>
    %150 = math.tanh %149 : vector<1x128xf32>
    %151 = arith.mulf %141, %150 : vector<1x128xf32>
    %152 = arith.mulf %151, %11 : vector<1x128xf32>
    %153 = arith.truncf %152 : vector<1x128xf32> to vector<1x128xbf16>
    %154 = vector.extract_strided_slice %9 {offsets = [6, 0], sizes = [1, 512], strides = [1, 1]} : vector<8x512xf32> to vector<1x512xf32>
    %cst_37 = arith.constant dense<0.000000e+00> : vector<1x512xf32>
    %155 = tpu.matmul %153, %10, %cst_37 {dimension_numbers = #tpu.dot_dimension_numbers<[1], [0], [0], [1], [0, 0, 1, 1], [], []>} : vector<1x128xbf16>, vector<128x512xbf16>, vector<1x512xf32> -> vector<1x512xf32>
    %156 = arith.addf %154, %155 : vector<1x512xf32>
    %157 = arith.negf %156 : vector<1x512xf32>
    %158 = math.exp %157 : vector<1x512xf32>
    %cst_38 = arith.constant 1.000000e+00 : f32
    %159 = vector.broadcast %cst_38 : f32 to vector<1x512xf32>
    %160 = arith.addf %159, %158 : vector<1x512xf32>
    %161 = arith.divf %159, %160 : vector<1x512xf32>
    %162 = vector.extract_strided_slice %161 {offsets = [0, 0], sizes = [1, 128], strides = [1, 1]} : vector<1x512xf32> to vector<1x128xf32>
    %163 = vector.extract_strided_slice %161 {offsets = [0, 128], sizes = [1, 128], strides = [1, 1]} : vector<1x512xf32> to vector<1x128xf32>
    %164 = vector.extract_strided_slice %161 {offsets = [0, 256], sizes = [1, 128], strides = [1, 1]} : vector<1x512xf32> to vector<1x128xf32>
    %165 = vector.extract_strided_slice %161 {offsets = [0, 384], sizes = [1, 128], strides = [1, 1]} : vector<1x512xf32> to vector<1x128xf32>
    %cst_39 = arith.constant 2.000000e+00 : f32
    %166 = vector.broadcast %cst_39 : f32 to vector<1x128xf32>
    %167 = arith.mulf %166, %165 : vector<1x128xf32>
    %cst_40 = arith.constant 1.000000e+00 : f32
    %168 = vector.broadcast %cst_40 : f32 to vector<1x128xf32>
    %169 = arith.subf %167, %168 : vector<1x128xf32>
    %170 = arith.mulf %163, %149 : vector<1x128xf32>
    %171 = arith.mulf %162, %169 : vector<1x128xf32>
    %172 = arith.addf %170, %171 : vector<1x128xf32>
    %173 = math.tanh %172 : vector<1x128xf32>
    %174 = arith.mulf %164, %173 : vector<1x128xf32>
    %175 = arith.mulf %174, %11 : vector<1x128xf32>
    %176 = arith.truncf %175 : vector<1x128xf32> to vector<1x128xbf16>
    %177 = vector.extract_strided_slice %9 {offsets = [7, 0], sizes = [1, 512], strides = [1, 1]} : vector<8x512xf32> to vector<1x512xf32>
    %cst_41 = arith.constant dense<0.000000e+00> : vector<1x512xf32>
    %178 = tpu.matmul %176, %10, %cst_41 {dimension_numbers = #tpu.dot_dimension_numbers<[1], [0], [0], [1], [0, 0, 1, 1], [], []>} : vector<1x128xbf16>, vector<128x512xbf16>, vector<1x512xf32> -> vector<1x512xf32>
    %179 = arith.addf %177, %178 : vector<1x512xf32>
    %180 = arith.negf %179 : vector<1x512xf32>
    %181 = math.exp %180 : vector<1x512xf32>
    %cst_42 = arith.constant 1.000000e+00 : f32
    %182 = vector.broadcast %cst_42 : f32 to vector<1x512xf32>
    %183 = arith.addf %182, %181 : vector<1x512xf32>
    %184 = arith.divf %182, %183 : vector<1x512xf32>
    %185 = vector.extract_strided_slice %184 {offsets = [0, 0], sizes = [1, 128], strides = [1, 1]} : vector<1x512xf32> to vector<1x128xf32>
    %186 = vector.extract_strided_slice %184 {offsets = [0, 128], sizes = [1, 128], strides = [1, 1]} : vector<1x512xf32> to vector<1x128xf32>
    %187 = vector.extract_strided_slice %184 {offsets = [0, 256], sizes = [1, 128], strides = [1, 1]} : vector<1x512xf32> to vector<1x128xf32>
    %188 = vector.extract_strided_slice %184 {offsets = [0, 384], sizes = [1, 128], strides = [1, 1]} : vector<1x512xf32> to vector<1x128xf32>
    %cst_43 = arith.constant 2.000000e+00 : f32
    %189 = vector.broadcast %cst_43 : f32 to vector<1x128xf32>
    %190 = arith.mulf %189, %188 : vector<1x128xf32>
    %cst_44 = arith.constant 1.000000e+00 : f32
    %191 = vector.broadcast %cst_44 : f32 to vector<1x128xf32>
    %192 = arith.subf %190, %191 : vector<1x128xf32>
    %193 = arith.mulf %186, %172 : vector<1x128xf32>
    %194 = arith.mulf %185, %192 : vector<1x128xf32>
    %195 = arith.addf %193, %194 : vector<1x128xf32>
    %196 = math.tanh %195 : vector<1x128xf32>
    %197 = arith.mulf %187, %196 : vector<1x128xf32>
    %198 = tpu.concatenate %36, %59, %82, %105, %128, %151, %174, %197 in 0 : vector<1x128xf32>, vector<1x128xf32>, vector<1x128xf32>, vector<1x128xf32>, vector<1x128xf32>, vector<1x128xf32>, vector<1x128xf32>, vector<1x128xf32> -> vector<8x128xf32>
    %c0_45 = arith.constant 0 : index
    %c0_46 = arith.constant 0 : index
    %199 = vector.load %arg8[%c0_45, %c0_46] : memref<8x128xf32, #tpu.memory_space<vmem>>, vector<8x128xf32>
    tpu.vector_store %arg8[%c0_45, %c0_46], %198 {strides = array<i32>} : memref<8x128xf32, #tpu.memory_space<vmem>>, vector<8x128xf32>,
    %200 = arith.truncf %198 : vector<8x128xf32> to vector<8x128xbf16>
    %c0_47 = arith.constant 0 : index
    %c0_48 = arith.constant 0 : index
    %201 = vector.load %arg6[%c0_47, %c0_48] : memref<128x128xbf16, #tpu.memory_space<vmem>>, vector<128x128xbf16>
    %cst_49 = arith.constant dense<0.000000e+00> : vector<8x128xf32>
    %202 = tpu.matmul %200, %201, %cst_49 {dimension_numbers = #tpu.dot_dimension_numbers<[1], [0], [0], [1], [0, 0, 1, 1], [], []>} : vector<8x128xbf16>, vector<128x128xbf16>, vector<8x128xf32> -> vector<8x128xf32>
    %c0_50 = arith.constant 0 : index
    %c0_51 = arith.constant 0 : index
    %203 = vector.load %arg7[%c0_50, %c0_51] : memref<1x128xf32, #tpu.memory_space<vmem>>, vector<1x128xf32>
    %204 = vector.broadcast %203 : vector<1x128xf32> to vector<8x128xf32>
    %205 = arith.addf %202, %204 : vector<8x128xf32>
    %c0_52 = arith.constant 0 : index
    %c0_53 = arith.constant 0 : index
    %206 = vector.load %arg9[%c0_52, %c0_53] : memref<8x128xf32, #tpu.memory_space<vmem>>, vector<8x128xf32>
    tpu.vector_store %arg9[%c0_52, %c0_53], %205 {strides = array<i32>} : memref<8x128xf32, #tpu.memory_space<vmem>>, vector<8x128xf32>,
    return
  }
}

</mosaic_0001>

<llo_original>
// kernel: tpu_custom_call.1
$region0: #{tpu_custom_call.1}
  #allocation0 [shape = 'u32[]', space=smem, size = 0x4, offset = 0x4, fixed_abs, tag = 'smem constant byte address 0x4 - core index']
  #allocation1 [shape = 'u32[144,128]{1,0:T(1,128)}', space=vmem, size = 0x12000, scoped, tag = 'internal scratch']
  %s0 = inlined_call_operand.hbm [shape: f32[8,32], index: 0, kind: input, shape index: {}]
  %s1 = inlined_call_operand.vmem [shape: f32[1,32], index: 1, kind: input, shape index: {}]
  %s2 = inlined_call_operand.vmem [shape: f32[1,128], index: 2, kind: input, shape index: {}]
  %s3 = inlined_call_operand.hbm [shape: bf16[32,512], index: 3, kind: input, shape index: {}]
  %s4 = inlined_call_operand.hbm [shape: bf16[128,512], index: 4, kind: input, shape index: {}]
  %s5 = inlined_call_operand.vmem [shape: f32[1,512], index: 5, kind: input, shape index: {}]
  %s6 = inlined_call_operand.hbm [shape: bf16[128,128], index: 6, kind: input, shape index: {}]
  %s7 = inlined_call_operand.vmem [shape: f32[1,128], index: 7, kind: input, shape index: {}]
  %s8 = inlined_call_operand.hbm [shape: f32[8,128], index: 8, kind: output, shape index: {0}]
  %s9 = inlined_call_operand.hbm [shape: f32[8,128], index: 9, kind: output, shape index: {1}]
  %10 = xla_tuple %s8, %s9
  %s11 = sld [smem:[#allocation0]]
  $region66: #{tpu_custom_call.1} parent=0
    _
  %s13 = ssub.s32 1, %s11
  %s14 = scalar_select 0, %s13, %s11
  $region1: #{tpu_custom_call.1} parent=0
    #allocation2 [shape = 'u8[4096]{0}', space=vmem, size = 0x1000, scoped, tag = 'input window, operand 0, single buffered']
    #allocation3 [shape = 's32[1]{0}', space=sflag, size = 0x4, scoped, tag = 'scoped memory for tpu_custom_call.1']
    #allocation4 [shape = 's32[1]{0}', space=sflag, size = 0x4, scoped, tag = 'scoped memory for tpu_custom_call.1']
    #allocation5 [shape = 'u8[32768]{0}', space=vmem, size = 0x8000, scoped, tag = 'input window, operand 3, single buffered']
    #allocation6 [shape = 's32[1]{0}', space=sflag, size = 0x4, scoped, tag = 'scoped memory for tpu_custom_call.1']
    #allocation7 [shape = 'u8[131072]{0}', space=vmem, size = 0x20000, scoped, tag = 'input window, operand 4, single buffered']
    #allocation8 [shape = 'u8[32768]{0}', space=vmem, size = 0x8000, scoped, tag = 'input window, operand 6, single buffered']
    #allocation9 [shape = 's32[1]{0}', space=sflag, size = 0x4, scoped, tag = 'scoped memory for tpu_custom_call.1']
    #allocation10 [shape = 'u8[4096]{0}', space=vmem, size = 0x1000, scoped, tag = 'output window, operand 0, single buffered']
    #allocation11 [shape = 'u8[4096]{0}', space=vmem, size = 0x1000, scoped, tag = 'output window, operand 1, single buffered']
    #allocation12 [shape = 's32[1]{0}', space=sflag, size = 0x4, scoped, tag = 'scoped memory for tpu_custom_call.1']
    %15 = vsyncpa [#allocation3], 0
    %16 = vsyncpa [#allocation6], 0
    %17 = vsyncpa [#allocation9], 0
    %18 = vsyncpa [#allocation4], 0
    %19 = vsyncpa [#allocation12], 0
    // Predicated region
    $region2: #{tpu_custom_call.1} parent=1 // pred_check
      _
    $region3: #{tpu_custom_call.1} parent=1 // pred_check_branch
      %21 = sbr.rel (0) target = $region5
    $region4: #{tpu_custom_call.1} parent=1 // pred_region
      %s23 = ssub.s32 128, 128
      %24 = vsyncadd [#allocation3], %s23
      %s26 = sshll.u32 [#allocation2], 4
      %s27 = int_to_ptr.vmem [resolvable:$true] %s26
      %29 = dma.hbm_to_vmem [thread:$0]  %s0, 128, %s27, [#allocation3]
    $region5: #{tpu_custom_call.1} parent=1 // pred_fallthru
      _
    // Predicated region
    $region6: #{tpu_custom_call.1} parent=1 // pred_check
      _
    $region7: #{tpu_custom_call.1} parent=1 // pred_check_branch
      %31 = sbr.rel (0) target = $region9
    $region8: #{tpu_custom_call.1} parent=1 // pred_region
      _
    $region9: #{tpu_custom_call.1} parent=1 // pred_fallthru
      _
    // Predicated region
    $region10: #{tpu_custom_call.1} parent=1 // pred_check
      _
    $region11: #{tpu_custom_call.1} parent=1 // pred_check_branch
      %33 = sbr.rel (0) target = $region13
    $region12: #{tpu_custom_call.1} parent=1 // pred_region
      _
    $region13: #{tpu_custom_call.1} parent=1 // pred_fallthru
      _
    // Predicated region
    $region14: #{tpu_custom_call.1} parent=1 // pred_check
      _
    $region15: #{tpu_custom_call.1} parent=1 // pred_check_branch
      %35 = sbr.rel (0) target = $region17
    $region16: #{tpu_custom_call.1} parent=1 // pred_region
      %s37 = ssub.s32 1024, 1024
      %38 = vsyncadd [#allocation6], %s37
      %s39 = sshll.u32 [#allocation5], 4
      %s40 = int_to_ptr.vmem [resolvable:$true] %s39
      %45 = dma.hbm_to_vmem [thread:$0]  %s3, 1024, %s40, [#allocation6], 256, 256, 16
    $region17: #{tpu_custom_call.1} parent=1 // pred_fallthru
      _
    // Predicated region
    $region18: #{tpu_custom_call.1} parent=1 // pred_check
      _
    $region19: #{tpu_custom_call.1} parent=1 // pred_check_branch
      %47 = sbr.rel (0) target = $region21
    $region20: #{tpu_custom_call.1} parent=1 // pred_region
      %s49 = ssub.s32 4096, 4096
      %50 = vsyncadd [#allocation6], %s49
      %s51 = sshll.u32 [#allocation7], 4
      %s52 = int_to_ptr.vmem [resolvable:$true] %s51
      %57 = dma.hbm_to_vmem [thread:$0]  %s4, 4096, %s52, [#allocation6], 256, 256, 16
    $region21: #{tpu_custom_call.1} parent=1 // pred_fallthru
      _
    // Predicated region
    $region22: #{tpu_custom_call.1} parent=1 // pred_check
      _
    $region23: #{tpu_custom_call.1} parent=1 // pred_check_branch
      %59 = sbr.rel (0) target = $region25
    $region24: #{tpu_custom_call.1} parent=1 // pred_region
      _
    $region25: #{tpu_custom_call.1} parent=1 // pred_fallthru
      _
    // Predicated region
    $region26: #{tpu_custom_call.1} parent=1 // pred_check
      _
    $region27: #{tpu_custom_call.1} parent=1 // pred_check_branch
      %61 = sbr.rel (0) target = $region29
    $region28: #{tpu_custom_call.1} parent=1 // pred_region
      %s63 = ssub.s32 1024, 1024
      %64 = vsyncadd [#allocation9], %s63
      %s65 = sshll.u32 [#allocation8], 4
      %s66 = int_to_ptr.vmem [resolvable:$true] %s65
      %71 = dma.hbm_to_vmem [thread:$0]  %s6, 1024, %s66, [#allocation9], 64, 64, 4
    $region29: #{tpu_custom_call.1} parent=1 // pred_fallthru
      _
    // Predicated region
    $region30: #{tpu_custom_call.1} parent=1 // pred_check
      _
    $region31: #{tpu_custom_call.1} parent=1 // pred_check_branch
      %73 = sbr.rel (0) target = $region33
    $region32: #{tpu_custom_call.1} parent=1 // pred_region
      _
    $region33: #{tpu_custom_call.1} parent=1 // pred_fallthru
      _
    // Predicated region
    $region34: #{tpu_custom_call.1} parent=1 // pred_check
      _
    $region35: #{tpu_custom_call.1} parent=1 // pred_check_branch
      %75 = sbr.rel (0) target = $region37
    $region36: #{tpu_custom_call.1} parent=1 // pred_region
      %76 = dma.done [#allocation3], 128
    $region37: #{tpu_custom_call.1} parent=1 // pred_fallthru
      _
    // Predicated region
    $region38: #{tpu_custom_call.1} parent=1 // pred_check
      _
    $region39: #{tpu_custom_call.1} parent=1 // pred_check_branch
      %78 = sbr.rel (0) target = $region41
    $region40: #{tpu_custom_call.1} parent=1 // pred_region
      %79 = dma.done [#allocation6], 1024
    $region41: #{tpu_custom_call.1} parent=1 // pred_fallthru
      _
    // Predicated region
    $region42: #{tpu_custom_call.1} parent=1 // pred_check
      _
    $region43: #{tpu_custom_call.1} parent=1 // pred_check_branch
      %81 = sbr.rel (0) target = $region45
    $region44: #{tpu_custom_call.1} parent=1 // pred_region
      %82 = dma.done [#allocation6], 4096
    $region45: #{tpu_custom_call.1} parent=1 // pred_fallthru
      _
    // Predicated region
    $region46: #{tpu_custom_call.1} parent=1 // pred_check
      _
    $region47: #{tpu_custom_call.1} parent=1 // pred_check_branch
      %84 = sbr.rel (0) target = $region49
    $region48: #{tpu_custom_call.1} parent=1 // pred_region
      %85 = dma.done [#allocation9], 1024
    $region49: #{tpu_custom_call.1} parent=1 // pred_fallthru
      _
    %v87 = vld [vmem:[#allocation2] sm:$0xff]
    %v88 = vld [vmem:[%s1] sm:$0x1]
    %v90 = vlaneseq
    %v91 = vshrl.u32 %v90, 7
    %v92 = vsub.s32 0, %v91
    %v93 = vrot.slane %v88, %v92
    %v95 = vmul.f32 %v87, %v93
    %v96 = vpack.c.bf16 %v95, %v95
    %v97 = vld [vmem:[#allocation5] sm:$0xff]
    %v98 = vld [vmem:[#allocation5 + $0x8] sm:$0xff]
    %v99 = vld [vmem:[#allocation5 + $0x10] sm:$0xff]
    %v100 = vld [vmem:[#allocation5 + $0x18] sm:$0xff]
    %v101 = vld [vmem:[#allocation5 + $0x20] sm:$0xff]
    %v102 = vld [vmem:[#allocation5 + $0x28] sm:$0xff]
    %v103 = vld [vmem:[#allocation5 + $0x30] sm:$0xff]
    %v104 = vld [vmem:[#allocation5 + $0x38] sm:$0xff]
    %v105 = vld [vmem:[%s5] sm:$0xf]
    %v107 = vlaneseq
    %v108 = vshrl.u32 %v107, 7
    %v109 = vsub.s32 0, %v108
    %v110 = vrot.slane %v105, %v109
    %v111 = vlaneseq
    %v112 = vshrl.u32 %v111, 7
    %v113 = vsub.s32 1, %v112
    %v114 = vrot.slane %v105, %v113
    %v115 = vlaneseq
    %v116 = vshrl.u32 %v115, 7
    %v117 = vsub.s32 2, %v116
    %v118 = vrot.slane %v105, %v117
    %v119 = vlaneseq
    %v120 = vshrl.u32 %v119, 7
    %v121 = vsub.s32 3, %v120
    %v122 = vrot.slane %v105, %v121
    %v135 = vunpack.c.l.b16 %v97
    %v136 = vunpack.c.h.b16 %v97
    %v137 = vunpack.c.l.b16 %v98
    %v138 = vunpack.c.h.b16 %v98
    %v139 = vunpack.c.l.b16 %v99
    %v140 = vunpack.c.h.b16 %v99
    %v141 = vunpack.c.l.b16 %v100
    %v142 = vunpack.c.h.b16 %v100
    %v143 = vunpack.c.l.b16 %v101
    %v144 = vunpack.c.h.b16 %v101
    %v145 = vunpack.c.l.b16 %v102
    %v146 = vunpack.c.h.b16 %v102
    %v147 = vunpack.c.l.b16 %v103
    %v148 = vunpack.c.h.b16 %v103
    %v149 = vunpack.c.l.b16 %v104
    %v150 = vunpack.c.h.b16 %v104
    %v151 = vpack.c.b16 %v139, %v135
    %v152 = vpack.c.b16 %v140, %v136
    %v153 = vpack.c.b16 %v141, %v137
    %v154 = vpack.c.b16 %v142, %v138
    %v155 = vpack.c.b16 %v147, %v143
    %v156 = vpack.c.b16 %v148, %v144
    %v157 = vpack.c.b16 %v149, %v145
    %v158 = vpack.c.b16 %v150, %v146
    %vm167 = vcmask 261120
    %v169 = vsel %vm167, %v96, 0
    %171 = vmatprep.subr.bf16.mxu0 %v152
    %172 = vmatpush1.bf16.msra.mxu0 %v151
    %173 = vmatprep.subr.bf16.mxu0 %v156
    %174 = vmatpush1.bf16.msra.mxu0 %v155
    %175 = vmatprep.subr.bf16.mxu0 0
    %176 = vmatpush1.bf16.msra.mxu0 0
    %177 = vmatprep.subr.bf16.mxu0 0
    %178 = vmatpush1.bf16.msra.mxu0 0
    %179 = vmatprep.subr.bf16.mxu0 0
    %180 = vmatpush1.bf16.msra.mxu0 0
    %181 = vmatprep.subr.bf16.mxu0 0
    %182 = vmatpush1.bf16.msra.mxu0 0
    %183 = vmatprep.subr.bf16.mxu0 0
    %184 = vmatpush1.bf16.msra.mxu0 0
    %185 = vmatprep.subr.bf16.mxu0 0
    %186 = vmatpush1.bf16.msra.mxu0 0
    %187 = vmatprep.subr.bf16.mxu0 0
    %188 = vmatpush1.bf16.msra.mxu0 0
    %189 = vmatprep.subr.bf16.mxu0 0
    %190 = vmatpush1.bf16.msra.mxu0 0
    %191 = vmatprep.subr.bf16.mxu0 0
    %192 = vmatpush1.bf16.msra.mxu0 0
    %193 = vmatprep.subr.bf16.mxu0 0
    %194 = vmatpush1.bf16.msra.mxu0 0
    %195 = vmatprep.subr.bf16.mxu0 0
    %196 = vmatpush1.bf16.msra.mxu0 0
    %197 = vmatprep.subr.bf16.mxu0 0
    %198 = vmatpush1.bf16.msra.mxu0 0
    %199 = vmatprep.subr.bf16.mxu0 0
    %200 = vmatpush1.bf16.msra.mxu0 0
    %201 = vmatprep.subr.bf16.mxu0 0
    %202 = vmatpush1.bf16.msra.mxu0 0
    %203 = vmatprep.mubr.bf16.mxu0 0
    %204 = vmatmul.mubr.bf16.gmra.mrb[0].mxu0 %v169
    %v205 = vpop.f32.mrb[0].mxu0
    %v206 = vadd.f32 %v110, %v205
    %v207 = vpop.f32.mrb[0].mxu0
    %v208 = vadd.f32 %v114, %v207
    %v209 = vpop.f32.mrb[0].mxu0
    %v210 = vpop.f32.mrb[0].mxu0
    %211 = vdwg.mxu0
    %212 = vmatprep.subr.bf16.mxu0 %v154
    %213 = vmatpush1.bf16.msra.mxu0 %v153
    %214 = vmatprep.subr.bf16.mxu0 %v158
    %215 = vmatpush1.bf16.msra.mxu0 %v157
    %216 = vmatprep.subr.bf16.mxu0 0
    %217 = vmatpush1.bf16.msra.mxu0 0
    %218 = vmatprep.subr.bf16.mxu0 0
    %219 = vmatpush1.bf16.msra.mxu0 0
    %220 = vmatprep.subr.bf16.mxu0 0
    %221 = vmatpush1.bf16.msra.mxu0 0
    %222 = vmatprep.subr.bf16.mxu0 0
    %223 = vmatpush1.bf16.msra.mxu0 0
    %224 = vmatprep.subr.bf16.mxu0 0
    %225 = vmatpush1.bf16.msra.mxu0 0
    %226 = vmatprep.subr.bf16.mxu0 0
    %227 = vmatpush1.bf16.msra.mxu0 0
    %228 = vmatprep.subr.bf16.mxu0 0
    %229 = vmatpush1.bf16.msra.mxu0 0
    %230 = vmatprep.subr.bf16.mxu0 0
    %231 = vmatpush1.bf16.msra.mxu0 0
    %232 = vmatprep.subr.bf16.mxu0 0
    %233 = vmatpush1.bf16.msra.mxu0 0
    %234 = vmatprep.subr.bf16.mxu0 0
    %235 = vmatpush1.bf16.msra.mxu0 0
    %236 = vmatprep.subr.bf16.mxu0 0
    %237 = vmatpush1.bf16.msra.mxu0 0
    %238 = vmatprep.subr.bf16.mxu0 0
    %239 = vmatpush1.bf16.msra.mxu0 0
    %240 = vmatprep.subr.bf16.mxu0 0
    %241 = vmatpush1.bf16.msra.mxu0 0
    %242 = vmatprep.subr.bf16.mxu0 0
    %243 = vmatpush1.bf16.msra.mxu0 0
    %244 = vmatprep.mubr.bf16.mxu0 0
    %245 = vmatmul.mubr.bf16.gmra.mrb[0].mxu0 %v169
    %v246 = vpop.f32.mrb[0].mxu0
    %v247 = vadd.f32 %v118, %v246
    %v248 = vpop.f32.mrb[0].mxu0
    %v249 = vadd.f32 %v122, %v248
    %v250 = vpop.f32.mrb[0].mxu0
    %v251 = vpop.f32.mrb[0].mxu0
    %252 = vdwg.mxu0
    %v253 = vld [vmem:[#allocation7] sm:$0xff]
    %v254 = vld [vmem:[#allocation7 + $0x8] sm:$0xff]
    %v255 = vld [vmem:[#allocation7 + $0x10] sm:$0xff]
    %v256 = vld [vmem:[#allocation7 + $0x18] sm:$0xff]
    %v257 = vld [vmem:[#allocation7 + $0x20] sm:$0xff]
    %v258 = vld [vmem:[#allocation7 + $0x28] sm:$0xff]
    %v259 = vld [vmem:[#allocation7 + $0x30] sm:$0xff]
    %v260 = vld [vmem:[#allocation7 + $0x38] sm:$0xff]
    %v261 = vld [vmem:[#allocation7 + $0x40] sm:$0xff]
    %v262 = vld [vmem:[#allocation7 + $0x48] sm:$0xff]
    %v263 = vld [vmem:[#allocation7 + $0x50] sm:$0xff]
    %v264 = vld [vmem:[#allocation7 + $0x58] sm:$0xff]
    %v265 = vld [vmem:[#allocation7 + $0x60] sm:$0xff]
    %v266 = vld [vmem:[#allocation7 + $0x68] sm:$0xff]
    %v267 = vld [vmem:[#allocation7 + $0x70] sm:$0xff]
    %v268 = vld [vmem:[#allocation7 + $0x78] sm:$0xff]
    %v269 = vld [vmem:[#allocation7 + $0x80] sm:$0xff]
    %v270 = vld [vmem:[#allocation7 + $0x88] sm:$0xff]
    %v271 = vld [vmem:[#allocation7 + $0x90] sm:$0xff]
    %v272 = vld [vmem:[#allocation7 + $0x98] sm:$0xff]
    %v273 = vld [vmem:[#allocation7 + $0xa0] sm:$0xff]
    %v274 = vld [vmem:[#allocation7 + $0xa8] sm:$0xff]
    %v275 = vld [vmem:[#allocation7 + $0xb0] sm:$0xff]
    %v276 = vld [vmem:[#allocation7 + $0xb8] sm:$0xff]
    %v277 = vld [vmem:[#allocation7 + $0xc0] sm:$0xff]
    %v278 = vld [vmem:[#allocation7 + $0xc8] sm:$0xff]
    %v279 = vld [vmem:[#allocation7 + $0xd0] sm:$0xff]
    %v280 = vld [vmem:[#allocation7 + $0xd8] sm:$0xff]
    %v281 = vld [vmem:[#allocation7 + $0xe0] sm:$0xff]
    %v282 = vld [vmem:[#allocation7 + $0xe8] sm:$0xff]
    %v283 = vld [vmem:[#allocation7 + $0xf0] sm:$0xff]
    %v284 = vld [vmem:[#allocation7 + $0xf8] sm:$0xff]
    %v285 = vld [vmem:[%s2] sm:$0x1]
    %v286 = vmul.f32 %v285, 0.0
    %v287 = vpack.c.bf16 %v286, %v286
    %v320 = vunpack.c.l.b16 %v253
    %v321 = vunpack.c.h.b16 %v253
    %v322 = vunpack.c.l.b16 %v254
    %v323 = vunpack.c.h.b16 %v254
    %v324 = vunpack.c.l.b16 %v255
    %v325 = vunpack.c.h.b16 %v255
    %v326 = vunpack.c.l.b16 %v256
    %v327 = vunpack.c.h.b16 %v256
    %v328 = vunpack.c.l.b16 %v257
    %v329 = vunpack.c.h.b16 %v257
    %v330 = vunpack.c.l.b16 %v258
    %v331 = vunpack.c.h.b16 %v258
    %v332 = vunpack.c.l.b16 %v259
    %v333 = vunpack.c.h.b16 %v259
    %v334 = vunpack.c.l.b16 %v260
    %v335 = vunpack.c.h.b16 %v260
    %v336 = vunpack.c.l.b16 %v261
    %v337 = vunpack.c.h.b16 %v261
    %v338 = vunpack.c.l.b16 %v262
    %v339 = vunpack.c.h.b16 %v262
    %v340 = vunpack.c.l.b16 %v263
    %v341 = vunpack.c.h.b16 %v263
    %v342 = vunpack.c.l.b16 %v264
    %v343 = vunpack.c.h.b16 %v264
    %v344 = vunpack.c.l.b16 %v265
    %v345 = vunpack.c.h.b16 %v265
    %v346 = vunpack.c.l.b16 %v266
    %v347 = vunpack.c.h.b16 %v266
    %v348 = vunpack.c.l.b16 %v267
    %v349 = vunpack.c.h.b16 %v267
    %v350 = vunpack.c.l.b16 %v268
    %v351 = vunpack.c.h.b16 %v268
    %v352 = vunpack.c.l.b16 %v269
    %v353 = vunpack.c.h.b16 %v269
    %v354 = vunpack.c.l.b16 %v270
    %v355 = vunpack.c.h.b16 %v270
    %v356 = vunpack.c.l.b16 %v271
    %v357 = vunpack.c.h.b16 %v271
    %v358 = vunpack.c.l.b16 %v272
    %v359 = vunpack.c.h.b16 %v272
    %v360 = vunpack.c.l.b16 %v273
    %v361 = vunpack.c.h.b16 %v273
    %v362 = vunpack.c.l.b16 %v274
    %v363 = vunpack.c.h.b16 %v274
    %v364 = vunpack.c.l.b16 %v275
    %v365 = vunpack.c.h.b16 %v275
    %v366 = vunpack.c.l.b16 %v276
    %v367 = vunpack.c.h.b16 %v276
    %v368 = vunpack.c.l.b16 %v277
    %v369 = vunpack.c.h.b16 %v277
    %v370 = vunpack.c.l.b16 %v278
    %v371 = vunpack.c.h.b16 %v278
    %v372 = vunpack.c.l.b16 %v279
    %v373 = vunpack.c.h.b16 %v279
    %v374 = vunpack.c.l.b16 %v280
    %v375 = vunpack.c.h.b16 %v280
    %v376 = vunpack.c.l.b16 %v281
    %v377 = vunpack.c.h.b16 %v281
    %v378 = vunpack.c.l.b16 %v282
    %v379 = vunpack.c.h.b16 %v282
    %v380 = vunpack.c.l.b16 %v283
    %v381 = vunpack.c.h.b16 %v283
    %v382 = vunpack.c.l.b16 %v284
    %v383 = vunpack.c.h.b16 %v284
    %v384 = vpack.c.b16 %v324, %v320
    %v385 = vpack.c.b16 %v325, %v321
    %v386 = vpack.c.b16 %v326, %v322
    %v387 = vpack.c.b16 %v327, %v323
    %v388 = vpack.c.b16 %v332, %v328
    %v389 = vpack.c.b16 %v333, %v329
    %v390 = vpack.c.b16 %v334, %v330
    %v391 = vpack.c.b16 %v335, %v331
    %v392 = vpack.c.b16 %v340, %v336
    %v393 = vpack.c.b16 %v341, %v337
    %v394 = vpack.c.b16 %v342, %v338
    %v395 = vpack.c.b16 %v343, %v339
    %v396 = vpack.c.b16 %v348, %v344
    %v397 = vpack.c.b16 %v349, %v345
    %v398 = vpack.c.b16 %v350, %v346
    %v399 = vpack.c.b16 %v351, %v347
    %v400 = vpack.c.b16 %v356, %v352
    %v401 = vpack.c.b16 %v357, %v353
    %v402 = vpack.c.b16 %v358, %v354
    %v403 = vpack.c.b16 %v359, %v355
    %v404 = vpack.c.b16 %v364, %v360
    %v405 = vpack.c.b16 %v365, %v361
    %v406 = vpack.c.b16 %v366, %v362
    %v407 = vpack.c.b16 %v367, %v363
    %v408 = vpack.c.b16 %v372, %v368
    %v409 = vpack.c.b16 %v373, %v369
    %v410 = vpack.c.b16 %v374, %v370
    %v411 = vpack.c.b16 %v375, %v371
    %v412 = vpack.c.b16 %v380, %v376
    %v413 = vpack.c.b16 %v381, %v377
    %v414 = vpack.c.b16 %v382, %v378
    %v415 = vpack.c.b16 %v383, %v379
    %448 = vmatprep.subr.bf16.mxu0 %v385
    %449 = vmatpush1.bf16.msra.mxu0 %v384
    %450 = vmatprep.subr.bf16.mxu0 %v389
    %451 = vmatpush1.bf16.msra.mxu0 %v388
    %452 = vmatprep.subr.bf16.mxu0 %v393
    %453 = vmatpush1.bf16.msra.mxu0 %v392
    %454 = vmatprep.subr.bf16.mxu0 %v397
    %455 = vmatpush1.bf16.msra.mxu0 %v396
    %456 = vmatprep.subr.bf16.mxu0 %v401
    %457 = vmatpush1.bf16.msra.mxu0 %v400
    %458 = vmatprep.subr.bf16.mxu0 %v405
    %459 = vmatpush1.bf16.msra.mxu0 %v404
    %460 = vmatprep.subr.bf16.mxu0 %v409
    %461 = vmatpush1.bf16.msra.mxu0 %v408
    %462 = vmatprep.subr.bf16.mxu0 %v413
    %463 = vmatpush1.bf16.msra.mxu0 %v412
    %464 = vmatprep.subr.bf16.mxu0 0
    %465 = vmatpush1.bf16.msra.mxu0 0
    %466 = vmatprep.subr.bf16.mxu0 0
    %467 = vmatpush1.bf16.msra.mxu0 0
    %468 = vmatprep.subr.bf16.mxu0 0
    %469 = vmatpush1.bf16.msra.mxu0 0
    %470 = vmatprep.subr.bf16.mxu0 0
    %471 = vmatpush1.bf16.msra.mxu0 0
    %472 = vmatprep.subr.bf16.mxu0 0
    %473 = vmatpush1.bf16.msra.mxu0 0
    %474 = vmatprep.subr.bf16.mxu0 0
    %475 = vmatpush1.bf16.msra.mxu0 0
    %476 = vmatprep.subr.bf16.mxu0 0
    %477 = vmatpush1.bf16.msra.mxu0 0
    %478 = vmatprep.subr.bf16.mxu0 0
    %479 = vmatpush1.bf16.msra.mxu0 0
    %480 = vmatprep.mubr.bf16.mxu0 0
    %481 = vmatmul.mubr.bf16.gmra.mrb[0].mxu0 %v287
    %v482 = vpop.f32.mrb[0].mxu0
    %v483 = vadd.f32 0.0, %v482
    %v484 = vpop.f32.mrb[0].mxu0
    %v485 = vadd.f32 0.0, %v484
    %v486 = vpop.f32.mrb[0].mxu0
    %v487 = vpop.f32.mrb[0].mxu0
    %488 = vdwg.mxu0
    %489 = vmatprep.subr.bf16.mxu0 %v387
    %490 = vmatpush1.bf16.msra.mxu0 %v386
    %491 = vmatprep.subr.bf16.mxu0 %v391
    %492 = vmatpush1.bf16.msra.mxu0 %v390
    %493 = vmatprep.subr.bf16.mxu0 %v395
    %494 = vmatpush1.bf16.msra.mxu0 %v394
    %495 = vmatprep.subr.bf16.mxu0 %v399
    %496 = vmatpush1.bf16.msra.mxu0 %v398
    %497 = vmatprep.subr.bf16.mxu0 %v403
    %498 = vmatpush1.bf16.msra.mxu0 %v402
    %499 = vmatprep.subr.bf16.mxu0 %v407
    %500 = vmatpush1.bf16.msra.mxu0 %v406
    %501 = vmatprep.subr.bf16.mxu0 %v411
    %502 = vmatpush1.bf16.msra.mxu0 %v410
    %503 = vmatprep.subr.bf16.mxu0 %v415
    %504 = vmatpush1.bf16.msra.mxu0 %v414
    %505 = vmatprep.subr.bf16.mxu0 0
    %506 = vmatpush1.bf16.msra.mxu0 0
    %507 = vmatprep.subr.bf16.mxu0 0
    %508 = vmatpush1.bf16.msra.mxu0 0
    %509 = vmatprep.subr.bf16.mxu0 0
    %510 = vmatpush1.bf16.msra.mxu0 0
    %511 = vmatprep.subr.bf16.mxu0 0
    %512 = vmatpush1.bf16.msra.mxu0 0
    %513 = vmatprep.subr.bf16.mxu0 0
    %514 = vmatpush1.bf16.msra.mxu0 0
    %515 = vmatprep.subr.bf16.mxu0 0
    %516 = vmatpush1.bf16.msra.mxu0 0
    %517 = vmatprep.subr.bf16.mxu0 0
    %518 = vmatpush1.bf16.msra.mxu0 0
    %519 = vmatprep.subr.bf16.mxu0 0
    %520 = vmatpush1.bf16.msra.mxu0 0
    %521 = vmatprep.mubr.bf16.mxu0 0
    %522 = vmatmul.mubr.bf16.gmra.mrb[0].mxu0 %v287
    %v523 = vpop.f32.mrb[0].mxu0
    %v524 = vadd.f32 0.0, %v523
    %v525 = vpop.f32.mrb[0].mxu0
    %v526 = vadd.f32 0.0, %v525
    %v527 = vpop.f32.mrb[0].mxu0
    %v528 = vpop.f32.mrb[0].mxu0
    %529 = vdwg.mxu0
    %v530 = vadd.f32 %v206, %v483
    %v531 = vadd.f32 %v208, %v485
    %v532 = vadd.f32 %v247, %v524
    %v533 = vadd.f32 %v249, %v526
    %v534 = vxor.u32 %v530, 2147483648
    %v535 = vxor.u32 %v531, 2147483648
    %v536 = vxor.u32 %v532, 2147483648
    %v537 = vxor.u32 %v533, 2147483648
    %v538 = vmul.f32 %v534, 1.442695
    %v539 = vpow.pop %v538
    %v540 = vmul.f32 %v535, 1.442695
    %v541 = vpow.pop %v540
    %v542 = vmul.f32 %v536, 1.442695
    %v543 = vpow.pop %v542
    %v544 = vmul.f32 %v537, 1.442695
    %v545 = vpow.pop %v544
    %v546 = vadd.f32 %v539, 1.0
    %v547 = vadd.f32 %v541, 1.0
    %v548 = vadd.f32 %v543, 1.0
    %v549 = vadd.f32 %v545, 1.0
    %v550 = vrcp.pop %v546
    %v551 = vmul.f32 1.0, %v550
    %v552 = vrcp.pop %v547
    %v553 = vmul.f32 1.0, %v552
    %v554 = vrcp.pop %v548
    %v555 = vmul.f32 1.0, %v554
    %v556 = vrcp.pop %v549
    %v557 = vmul.f32 1.0, %v556
    %v558 = vmul.f32 %v557, 2.0
    %v559 = vsub.f32 %v558, 1.0
    %v560 = vmul.f32 %v553, 0.0
    %v561 = vmul.f32 %v551, %v559
    %v562 = vadd.f32 %v560, %v561
    %v563 = vtanh.pop %v562
    %v564 = vmul.f32 %v555, %v563
    %v565 = vmul.f32 %v564, %v285
    %v566 = vpack.c.bf16 %v565, %v565
    %567 = vmatprep.subr.bf16.mxu0 %v385
    %568 = vmatpush1.bf16.msra.mxu0 %v384
    %569 = vmatprep.subr.bf16.mxu0 %v389
    %570 = vmatpush1.bf16.msra.mxu0 %v388
    %571 = vmatprep.subr.bf16.mxu0 %v393
    %572 = vmatpush1.bf16.msra.mxu0 %v392
    %573 = vmatprep.subr.bf16.mxu0 %v397
    %574 = vmatpush1.bf16.msra.mxu0 %v396
    %575 = vmatprep.subr.bf16.mxu0 %v401
    %576 = vmatpush1.bf16.msra.mxu0 %v400
    %577 = vmatprep.subr.bf16.mxu0 %v405
    %578 = vmatpush1.bf16.msra.mxu0 %v404
    %579 = vmatprep.subr.bf16.mxu0 %v409
    %580 = vmatpush1.bf16.msra.mxu0 %v408
    %581 = vmatprep.subr.bf16.mxu0 %v413
    %582 = vmatpush1.bf16.msra.mxu0 %v412
    %583 = vmatprep.subr.bf16.mxu0 0
    %584 = vmatpush1.bf16.msra.mxu0 0
    %585 = vmatprep.subr.bf16.mxu0 0
    %586 = vmatpush1.bf16.msra.mxu0 0
    %587 = vmatprep.subr.bf16.mxu0 0
    %588 = vmatpush1.bf16.msra.mxu0 0
    %589 = vmatprep.subr.bf16.mxu0 0
    %590 = vmatpush1.bf16.msra.mxu0 0
    %591 = vmatprep.subr.bf16.mxu0 0
    %592 = vmatpush1.bf16.msra.mxu0 0
    %593 = vmatprep.subr.bf16.mxu0 0
    %594 = vmatpush1.bf16.msra.mxu0 0
    %595 = vmatprep.subr.bf16.mxu0 0
    %596 = vmatpush1.bf16.msra.mxu0 0
    %597 = vmatprep.subr.bf16.mxu0 0
    %598 = vmatpush1.bf16.msra.mxu0 0
    %599 = vmatprep.mubr.bf16.mxu0 0
    %600 = vmatmul.mubr.bf16.gmra.mrb[0].mxu0 %v566
    %v601 = vpop.f32.mrb[0].mxu0
    %v602 = vadd.f32 0.0, %v601
    %v603 = vpop.f32.mrb[0].mxu0
    %v604 = vadd.f32 0.0, %v603
    %v605 = vpop.f32.mrb[0].mxu0
    %v606 = vpop.f32.mrb[0].mxu0
    %607 = vdwg.mxu0
    %608 = vmatprep.subr.bf16.mxu0 %v387
    %609 = vmatpush1.bf16.msra.mxu0 %v386
    %610 = vmatprep.subr.bf16.mxu0 %v391
    %611 = vmatpush1.bf16.msra.mxu0 %v390
    %612 = vmatprep.subr.bf16.mxu0 %v395
    %613 = vmatpush1.bf16.msra.mxu0 %v394
    %614 = vmatprep.subr.bf16.mxu0 %v399
    %615 = vmatpush1.bf16.msra.mxu0 %v398
    %616 = vmatprep.subr.bf16.mxu0 %v403
    %617 = vmatpush1.bf16.msra.mxu0 %v402
    %618 = vmatprep.subr.bf16.mxu0 %v407
    %619 = vmatpush1.bf16.msra.mxu0 %v406
    %620 = vmatprep.subr.bf16.mxu0 %v411
    %621 = vmatpush1.bf16.msra.mxu0 %v410
    %622 = vmatprep.subr.bf16.mxu0 %v415
    %623 = vmatpush1.bf16.msra.mxu0 %v414
    %624 = vmatprep.subr.bf16.mxu0 0
    %625 = vmatpush1.bf16.msra.mxu0 0
    %626 = vmatprep.subr.bf16.mxu0 0
    %627 = vmatpush1.bf16.msra.mxu0 0
    %628 = vmatprep.subr.bf16.mxu0 0
    %629 = vmatpush1.bf16.msra.mxu0 0
    %630 = vmatprep.subr.bf16.mxu0 0
    %631 = vmatpush1.bf16.msra.mxu0 0
    %632 = vmatprep.subr.bf16.mxu0 0
    %633 = vmatpush1.bf16.msra.mxu0 0
    %634 = vmatprep.subr.bf16.mxu0 0
    %635 = vmatpush1.bf16.msra.mxu0 0
    %636 = vmatprep.subr.bf16.mxu0 0
    %637 = vmatpush1.bf16.msra.mxu0 0
    %638 = vmatprep.subr.bf16.mxu0 0
    %639 = vmatpush1.bf16.msra.mxu0 0
    %640 = vmatprep.mubr.bf16.mxu0 0
    %641 = vmatmul.mubr.bf16.gmra.mrb[0].mxu0 %v566
    %v642 = vpop.f32.mrb[0].mxu0
    %v643 = vadd.f32 0.0, %v642
    %v644 = vpop.f32.mrb[0].mxu0
    %v645 = vadd.f32 0.0, %v644
    %v646 = vpop.f32.mrb[0].mxu0
    %v647 = vpop.f32.mrb[0].mxu0
    %648 = vdwg.mxu0
    %v653 = vrot.slane %v602, 7
    %v654 = vrot.slane %v604, 7
    %v655 = vrot.slane %v643, 7
    %v656 = vrot.slane %v645, 7
    %v661 = vadd.f32 %v206, %v653
    %v662 = vadd.f32 %v208, %v654
    %v663 = vadd.f32 %v247, %v655
    %v664 = vadd.f32 %v249, %v656
    %v665 = vxor.u32 %v661, 2147483648
    %v666 = vxor.u32 %v662, 2147483648
    %v667 = vxor.u32 %v663, 2147483648
    %v668 = vxor.u32 %v664, 2147483648
    %v669 = vmul.f32 %v665, 1.442695
    %v670 = vpow.pop %v669
    %v671 = vmul.f32 %v666, 1.442695
    %v672 = vpow.pop %v671
    %v673 = vmul.f32 %v667, 1.442695
    %v674 = vpow.pop %v673
    %v675 = vmul.f32 %v668, 1.442695
    %v676 = vpow.pop %v675
    %v677 = vadd.f32 %v670, 1.0
    %v678 = vadd.f32 %v672, 1.0
    %v679 = vadd.f32 %v674, 1.0
    %v680 = vadd.f32 %v676, 1.0
    %v681 = vrcp.pop %v677
    %v682 = vmul.f32 1.0, %v681
    %v683 = vrcp.pop %v678
    %v684 = vmul.f32 1.0, %v683
    %v685 = vrcp.pop %v679
    %v686 = vmul.f32 1.0, %v685
    %v687 = vrcp.pop %v680
    %v688 = vmul.f32 1.0, %v687
    %v689 = vmul.f32 %v688, 2.0
    %v690 = vsub.f32 %v689, 1.0
    %v692 = vrot.slane %v562, 7
    %v694 = vmul.f32 %v684, %v692
    %v695 = vmul.f32 %v682, %v690
    %v696 = vadd.f32 %v694, %v695
    %v697 = vtanh.pop %v696
    %v698 = vmul.f32 %v686, %v697
    %v700 = vlaneseq
    %v701 = vshrl.u32 %v700, 7
    %v702 = vsub.s32 0, %v701
    %v703 = vrot.slane %v285, %v702
    %v705 = vmul.f32 %v698, %v703
    %v706 = vpack.c.bf16 %v705, %v705
    %v708 = vshrl.u32 %v706, 16
    %711 = vmatprep.subr.bf16.mxu0 %v385
    %712 = vmatpush1.bf16.msra.mxu0 %v384
    %713 = vmatprep.subr.bf16.mxu0 %v389
    %714 = vmatpush1.bf16.msra.mxu0 %v388
    %715 = vmatprep.subr.bf16.mxu0 %v393
    %716 = vmatpush1.bf16.msra.mxu0 %v392
    %717 = vmatprep.subr.bf16.mxu0 %v397
    %718 = vmatpush1.bf16.msra.mxu0 %v396
    %719 = vmatprep.subr.bf16.mxu0 %v401
    %720 = vmatpush1.bf16.msra.mxu0 %v400
    %721 = vmatprep.subr.bf16.mxu0 %v405
    %722 = vmatpush1.bf16.msra.mxu0 %v404
    %723 = vmatprep.subr.bf16.mxu0 %v409
    %724 = vmatpush1.bf16.msra.mxu0 %v408
    %725 = vmatprep.subr.bf16.mxu0 %v413
    %726 = vmatpush1.bf16.msra.mxu0 %v412
    %727 = vmatprep.subr.bf16.mxu0 0
    %728 = vmatpush1.bf16.msra.mxu0 0
    %729 = vmatprep.subr.bf16.mxu0 0
    %730 = vmatpush1.bf16.msra.mxu0 0
    %731 = vmatprep.subr.bf16.mxu0 0
    %732 = vmatpush1.bf16.msra.mxu0 0
    %733 = vmatprep.subr.bf16.mxu0 0
    %734 = vmatpush1.bf16.msra.mxu0 0
    %735 = vmatprep.subr.bf16.mxu0 0
    %736 = vmatpush1.bf16.msra.mxu0 0
    %737 = vmatprep.subr.bf16.mxu0 0
    %738 = vmatpush1.bf16.msra.mxu0 0
    %739 = vmatprep.subr.bf16.mxu0 0
    %740 = vmatpush1.bf16.msra.mxu0 0
    %741 = vmatprep.subr.bf16.mxu0 0
    %742 = vmatpush1.bf16.msra.mxu0 0
    %743 = vmatprep.mubr.bf16.mxu0 0
    %744 = vmatmul.mubr.bf16.gmra.mrb[0].mxu0 %v708
    %v745 = vpop.f32.mrb[0].mxu0
    %v746 = vadd.f32 0.0, %v745
    %v747 = vpop.f32.mrb[0].mxu0
    %v748 = vadd.f32 0.0, %v747
    %v749 = vpop.f32.mrb[0].mxu0
    %v750 = vpop.f32.mrb[0].mxu0
    %751 = vdwg.mxu0
    %752 = vmatprep.subr.bf16.mxu0 %v387
    %753 = vmatpush1.bf16.msra.mxu0 %v386
    %754 = vmatprep.subr.bf16.mxu0 %v391
    %755 = vmatpush1.bf16.msra.mxu0 %v390
    %756 = vmatprep.subr.bf16.mxu0 %v395
    %757 = vmatpush1.bf16.msra.mxu0 %v394
    %758 = vmatprep.subr.bf16.mxu0 %v399
    %759 = vmatpush1.bf16.msra.mxu0 %v398
    %760 = vmatprep.subr.bf16.mxu0 %v403
    %761 = vmatpush1.bf16.msra.mxu0 %v402
    %762 = vmatprep.subr.bf16.mxu0 %v407
    %763 = vmatpush1.bf16.msra.mxu0 %v406
    %764 = vmatprep.subr.bf16.mxu0 %v411
    %765 = vmatpush1.bf16.msra.mxu0 %v410
    %766 = vmatprep.subr.bf16.mxu0 %v415
    %767 = vmatpush1.bf16.msra.mxu0 %v414
    %768 = vmatprep.subr.bf16.mxu0 0
    %769 = vmatpush1.bf16.msra.mxu0 0
    %770 = vmatprep.subr.bf16.mxu0 0
    %771 = vmatpush1.bf16.msra.mxu0 0
    %772 = vmatprep.subr.bf16.mxu0 0
    %773 = vmatpush1.bf16.msra.mxu0 0
    %774 = vmatprep.subr.bf16.mxu0 0
    %775 = vmatpush1.bf16.msra.mxu0 0
    %776 = vmatprep.subr.bf16.mxu0 0
    %777 = vmatpush1.bf16.msra.mxu0 0
    %778 = vmatprep.subr.bf16.mxu0 0
    %779 = vmatpush1.bf16.msra.mxu0 0
    %780 = vmatprep.subr.bf16.mxu0 0
    %781 = vmatpush1.bf16.msra.mxu0 0
    %782 = vmatprep.subr.bf16.mxu0 0
    %783 = vmatpush1.bf16.msra.mxu0 0
    %784 = vmatprep.mubr.bf16.mxu0 0
    %785 = vmatmul.mubr.bf16.gmra.mrb[0].mxu0 %v708
    %v786 = vpop.f32.mrb[0].mxu0
    %v787 = vadd.f32 0.0, %v786
    %v788 = vpop.f32.mrb[0].mxu0
    %v789 = vadd.f32 0.0, %v788
    %v790 = vpop.f32.mrb[0].mxu0
    %v791 = vpop.f32.mrb[0].mxu0
    %792 = vdwg.mxu0
    %v797 = vrot.slane %v746, 6
    %v798 = vrot.slane %v748, 6
    %v799 = vrot.slane %v787, 6
    %v800 = vrot.slane %v789, 6
    %v805 = vadd.f32 %v206, %v797
    %v806 = vadd.f32 %v208, %v798
    %v807 = vadd.f32 %v247, %v799
    %v808 = vadd.f32 %v249, %v800
    %v809 = vxor.u32 %v805, 2147483648
    %v810 = vxor.u32 %v806, 2147483648
    %v811 = vxor.u32 %v807, 2147483648
    %v812 = vxor.u32 %v808, 2147483648
    %v813 = vmul.f32 %v809, 1.442695
    %v814 = vpow.pop %v813
    %v815 = vmul.f32 %v810, 1.442695
    %v816 = vpow.pop %v815
    %v817 = vmul.f32 %v811, 1.442695
    %v818 = vpow.pop %v817
    %v819 = vmul.f32 %v812, 1.442695
    %v820 = vpow.pop %v819
    %v821 = vadd.f32 %v814, 1.0
    %v822 = vadd.f32 %v816, 1.0
    %v823 = vadd.f32 %v818, 1.0
    %v824 = vadd.f32 %v820, 1.0
    %v825 = vrcp.pop %v821
    %v826 = vmul.f32 1.0, %v825
    %v827 = vrcp.pop %v822
    %v828 = vmul.f32 1.0, %v827
    %v829 = vrcp.pop %v823
    %v830 = vmul.f32 1.0, %v829
    %v831 = vrcp.pop %v824
    %v832 = vmul.f32 1.0, %v831
    %v833 = vmul.f32 %v832, 2.0
    %v834 = vsub.f32 %v833, 1.0
    %v836 = vrot.slane %v696, 7
    %v838 = vmul.f32 %v828, %v836
    %v839 = vmul.f32 %v826, %v834
    %v840 = vadd.f32 %v838, %v839
    %v841 = vtanh.pop %v840
    %v842 = vmul.f32 %v830, %v841
    %v843 = vmul.f32 %v842, %v703
    %v844 = vpack.c.bf16 %v843, %v843
    %v846 = vrot.slane %v844, 1
    %848 = vmatprep.subr.bf16.mxu0 %v385
    %849 = vmatpush1.bf16.msra.mxu0 %v384
    %850 = vmatprep.subr.bf16.mxu0 %v389
    %851 = vmatpush1.bf16.msra.mxu0 %v388
    %852 = vmatprep.subr.bf16.mxu0 %v393
    %853 = vmatpush1.bf16.msra.mxu0 %v392
    %854 = vmatprep.subr.bf16.mxu0 %v397
    %855 = vmatpush1.bf16.msra.mxu0 %v396
    %856 = vmatprep.subr.bf16.mxu0 %v401
    %857 = vmatpush1.bf16.msra.mxu0 %v400
    %858 = vmatprep.subr.bf16.mxu0 %v405
    %859 = vmatpush1.bf16.msra.mxu0 %v404
    %860 = vmatprep.subr.bf16.mxu0 %v409
    %861 = vmatpush1.bf16.msra.mxu0 %v408
    %862 = vmatprep.subr.bf16.mxu0 %v413
    %863 = vmatpush1.bf16.msra.mxu0 %v412
    %864 = vmatprep.subr.bf16.mxu0 0
    %865 = vmatpush1.bf16.msra.mxu0 0
    %866 = vmatprep.subr.bf16.mxu0 0
    %867 = vmatpush1.bf16.msra.mxu0 0
    %868 = vmatprep.subr.bf16.mxu0 0
    %869 = vmatpush1.bf16.msra.mxu0 0
    %870 = vmatprep.subr.bf16.mxu0 0
    %871 = vmatpush1.bf16.msra.mxu0 0
    %872 = vmatprep.subr.bf16.mxu0 0
    %873 = vmatpush1.bf16.msra.mxu0 0
    %874 = vmatprep.subr.bf16.mxu0 0
    %875 = vmatpush1.bf16.msra.mxu0 0
    %876 = vmatprep.subr.bf16.mxu0 0
    %877 = vmatpush1.bf16.msra.mxu0 0
    %878 = vmatprep.subr.bf16.mxu0 0
    %879 = vmatpush1.bf16.msra.mxu0 0
    %880 = vmatprep.mubr.bf16.mxu0 0
    %881 = vmatmul.mubr.bf16.gmra.mrb[0].mxu0 %v846
    %v882 = vpop.f32.mrb[0].mxu0
    %v883 = vadd.f32 0.0, %v882
    %v884 = vpop.f32.mrb[0].mxu0
    %v885 = vadd.f32 0.0, %v884
    %v886 = vpop.f32.mrb[0].mxu0
    %v887 = vpop.f32.mrb[0].mxu0
    %888 = vdwg.mxu0
    %889 = vmatprep.subr.bf16.mxu0 %v387
    %890 = vmatpush1.bf16.msra.mxu0 %v386
    %891 = vmatprep.subr.bf16.mxu0 %v391
    %892 = vmatpush1.bf16.msra.mxu0 %v390
    %893 = vmatprep.subr.bf16.mxu0 %v395
    %894 = vmatpush1.bf16.msra.mxu0 %v394
    %895 = vmatprep.subr.bf16.mxu0 %v399
    %896 = vmatpush1.bf16.msra.mxu0 %v398
    %897 = vmatprep.subr.bf16.mxu0 %v403
    %898 = vmatpush1.bf16.msra.mxu0 %v402
    %899 = vmatprep.subr.bf16.mxu0 %v407
    %900 = vmatpush1.bf16.msra.mxu0 %v406
    %901 = vmatprep.subr.bf16.mxu0 %v411
    %902 = vmatpush1.bf16.msra.mxu0 %v410
    %903 = vmatprep.subr.bf16.mxu0 %v415
    %904 = vmatpush1.bf16.msra.mxu0 %v414
    %905 = vmatprep.subr.bf16.mxu0 0
    %906 = vmatpush1.bf16.msra.mxu0 0
    %907 = vmatprep.subr.bf16.mxu0 0
    %908 = vmatpush1.bf16.msra.mxu0 0
    %909 = vmatprep.subr.bf16.mxu0 0
    %910 = vmatpush1.bf16.msra.mxu0 0
    %911 = vmatprep.subr.bf16.mxu0 0
    %912 = vmatpush1.bf16.msra.mxu0 0
    %913 = vmatprep.subr.bf16.mxu0 0
    %914 = vmatpush1.bf16.msra.mxu0 0
    %915 = vmatprep.subr.bf16.mxu0 0
    %916 = vmatpush1.bf16.msra.mxu0 0
    %917 = vmatprep.subr.bf16.mxu0 0
    %918 = vmatpush1.bf16.msra.mxu0 0
    %919 = vmatprep.subr.bf16.mxu0 0
    %920 = vmatpush1.bf16.msra.mxu0 0
    %921 = vmatprep.mubr.bf16.mxu0 0
    %922 = vmatmul.mubr.bf16.gmra.mrb[0].mxu0 %v846
    %v923 = vpop.f32.mrb[0].mxu0
    %v924 = vadd.f32 0.0, %v923
    %v925 = vpop.f32.mrb[0].mxu0
    %v926 = vadd.f32 0.0, %v925
    %v927 = vpop.f32.mrb[0].mxu0
    %v928 = vpop.f32.mrb[0].mxu0
    %929 = vdwg.mxu0
    %v934 = vrot.slane %v883, 5
    %v935 = vrot.slane %v885, 5
    %v936 = vrot.slane %v924, 5
    %v937 = vrot.slane %v926, 5
    %v942 = vadd.f32 %v206, %v934
    %v943 = vadd.f32 %v208, %v935
    %v944 = vadd.f32 %v247, %v936
    %v945 = vadd.f32 %v249, %v937
    %v946 = vxor.u32 %v942, 2147483648
    %v947 = vxor.u32 %v943, 2147483648
    %v948 = vxor.u32 %v944, 2147483648
    %v949 = vxor.u32 %v945, 2147483648
    %v950 = vmul.f32 %v946, 1.442695
    %v951 = vpow.pop %v950
    %v952 = vmul.f32 %v947, 1.442695
    %v953 = vpow.pop %v952
    %v954 = vmul.f32 %v948, 1.442695
    %v955 = vpow.pop %v954
    %v956 = vmul.f32 %v949, 1.442695
    %v957 = vpow.pop %v956
    %v958 = vadd.f32 %v951, 1.0
    %v959 = vadd.f32 %v953, 1.0
    %v960 = vadd.f32 %v955, 1.0
    %v961 = vadd.f32 %v957, 1.0
    %v962 = vrcp.pop %v958
    %v963 = vmul.f32 1.0, %v962
    %v964 = vrcp.pop %v959
    %v965 = vmul.f32 1.0, %v964
    %v966 = vrcp.pop %v960
    %v967 = vmul.f32 1.0, %v966
    %v968 = vrcp.pop %v961
    %v969 = vmul.f32 1.0, %v968
    %v970 = vmul.f32 %v969, 2.0
    %v971 = vsub.f32 %v970, 1.0
    %v973 = vrot.slane %v840, 7
    %v975 = vmul.f32 %v965, %v973
    %v976 = vmul.f32 %v963, %v971
    %v977 = vadd.f32 %v975, %v976
    %v978 = vtanh.pop %v977
    %v979 = vmul.f32 %v967, %v978
    %v980 = vmul.f32 %v979, %v703
    %v981 = vpack.c.bf16 %v980, %v980
    %v983 = vshrl.u32 %v981, 16
    %v985 = vrot.slane %v983, 1
    %987 = vmatprep.subr.bf16.mxu0 %v385
    %988 = vmatpush1.bf16.msra.mxu0 %v384
    %989 = vmatprep.subr.bf16.mxu0 %v389
    %990 = vmatpush1.bf16.msra.mxu0 %v388
    %991 = vmatprep.subr.bf16.mxu0 %v393
    %992 = vmatpush1.bf16.msra.mxu0 %v392
    %993 = vmatprep.subr.bf16.mxu0 %v397
    %994 = vmatpush1.bf16.msra.mxu0 %v396
    %995 = vmatprep.subr.bf16.mxu0 %v401
    %996 = vmatpush1.bf16.msra.mxu0 %v400
    %997 = vmatprep.subr.bf16.mxu0 %v405
    %998 = vmatpush1.bf16.msra.mxu0 %v404
    %999 = vmatprep.subr.bf16.mxu0 %v409
    %1000 = vmatpush1.bf16.msra.mxu0 %v408
    %1001 = vmatprep.subr.bf16.mxu0 %v413
    %1002 = vmatpush1.bf16.msra.mxu0 %v412
    %1003 = vmatprep.subr.bf16.mxu0 0
    %1004 = vmatpush1.bf16.msra.mxu0 0
    %1005 = vmatprep.subr.bf16.mxu0 0
    %1006 = vmatpush1.bf16.msra.mxu0 0
    %1007 = vmatprep.subr.bf16.mxu0 0
    %1008 = vmatpush1.bf16.msra.mxu0 0
    %1009 = vmatprep.subr.bf16.mxu0 0
    %1010 = vmatpush1.bf16.msra.mxu0 0
    %1011 = vmatprep.subr.bf16.mxu0 0
    %1012 = vmatpush1.bf16.msra.mxu0 0
    %1013 = vmatprep.subr.bf16.mxu0 0
    %1014 = vmatpush1.bf16.msra.mxu0 0
    %1015 = vmatprep.subr.bf16.mxu0 0
    %1016 = vmatpush1.bf16.msra.mxu0 0
    %1017 = vmatprep.subr.bf16.mxu0 0
    %1018 = vmatpush1.bf16.msra.mxu0 0
    %1019 = vmatprep.mubr.bf16.mxu0 0
    %1020 = vmatmul.mubr.bf16.gmra.mrb[0].mxu0 %v985
    %v1021 = vpop.f32.mrb[0].mxu0
    %v1022 = vadd.f32 0.0, %v1021
    %v1023 = vpop.f32.mrb[0].mxu0
    %v1024 = vadd.f32 0.0, %v1023
    %v1025 = vpop.f32.mrb[0].mxu0
    %v1026 = vpop.f32.mrb[0].mxu0
    %1027 = vdwg.mxu0
    %1028 = vmatprep.subr.bf16.mxu0 %v387
    %1029 = vmatpush1.bf16.msra.mxu0 %v386
    %1030 = vmatprep.subr.bf16.mxu0 %v391
    %1031 = vmatpush1.bf16.msra.mxu0 %v390
    %1032 = vmatprep.subr.bf16.mxu0 %v395
    %1033 = vmatpush1.bf16.msra.mxu0 %v394
    %1034 = vmatprep.subr.bf16.mxu0 %v399
    %1035 = vmatpush1.bf16.msra.mxu0 %v398
    %1036 = vmatprep.subr.bf16.mxu0 %v403
    %1037 = vmatpush1.bf16.msra.mxu0 %v402
    %1038 = vmatprep.subr.bf16.mxu0 %v407
    %1039 = vmatpush1.bf16.msra.mxu0 %v406
    %1040 = vmatprep.subr.bf16.mxu0 %v411
    %1041 = vmatpush1.bf16.msra.mxu0 %v410
    %1042 = vmatprep.subr.bf16.mxu0 %v415
    %1043 = vmatpush1.bf16.msra.mxu0 %v414
    %1044 = vmatprep.subr.bf16.mxu0 0
    %1045 = vmatpush1.bf16.msra.mxu0 0
    %1046 = vmatprep.subr.bf16.mxu0 0
    %1047 = vmatpush1.bf16.msra.mxu0 0
    %1048 = vmatprep.subr.bf16.mxu0 0
    %1049 = vmatpush1.bf16.msra.mxu0 0
    %1050 = vmatprep.subr.bf16.mxu0 0
    %1051 = vmatpush1.bf16.msra.mxu0 0
    %1052 = vmatprep.subr.bf16.mxu0 0
    %1053 = vmatpush1.bf16.msra.mxu0 0
    %1054 = vmatprep.subr.bf16.mxu0 0
    %1055 = vmatpush1.bf16.msra.mxu0 0
    %1056 = vmatprep.subr.bf16.mxu0 0
    %1057 = vmatpush1.bf16.msra.mxu0 0
    %1058 = vmatprep.subr.bf16.mxu0 0
    %1059 = vmatpush1.bf16.msra.mxu0 0
    %1060 = vmatprep.mubr.bf16.mxu0 0
    %1061 = vmatmul.mubr.bf16.gmra.mrb[0].mxu0 %v985
    %v1062 = vpop.f32.mrb[0].mxu0
    %v1063 = vadd.f32 0.0, %v1062
    %v1064 = vpop.f32.mrb[0].mxu0
    %v1065 = vadd.f32 0.0, %v1064
    %v1066 = vpop.f32.mrb[0].mxu0
    %v1067 = vpop.f32.mrb[0].mxu0
    %1068 = vdwg.mxu0
    %v1073 = vrot.slane %v1022, 4
    %v1074 = vrot.slane %v1024, 4
    %v1075 = vrot.slane %v1063, 4
    %v1076 = vrot.slane %v1065, 4
    %v1081 = vadd.f32 %v206, %v1073
    %v1082 = vadd.f32 %v208, %v1074
    %v1083 = vadd.f32 %v247, %v1075
    %v1084 = vadd.f32 %v249, %v1076
    %v1085 = vxor.u32 %v1081, 2147483648
    %v1086 = vxor.u32 %v1082, 2147483648
    %v1087 = vxor.u32 %v1083, 2147483648
    %v1088 = vxor.u32 %v1084, 2147483648
    %v1089 = vmul.f32 %v1085, 1.442695
    %v1090 = vpow.pop %v1089
    %v1091 = vmul.f32 %v1086, 1.442695
    %v1092 = vpow.pop %v1091
    %v1093 = vmul.f32 %v1087, 1.442695
    %v1094 = vpow.pop %v1093
    %v1095 = vmul.f32 %v1088, 1.442695
    %v1096 = vpow.pop %v1095
    %v1097 = vadd.f32 %v1090, 1.0
    %v1098 = vadd.f32 %v1092, 1.0
    %v1099 = vadd.f32 %v1094, 1.0
    %v1100 = vadd.f32 %v1096, 1.0
    %v1101 = vrcp.pop %v1097
    %v1102 = vmul.f32 1.0, %v1101
    %v1103 = vrcp.pop %v1098
    %v1104 = vmul.f32 1.0, %v1103
    %v1105 = vrcp.pop %v1099
    %v1106 = vmul.f32 1.0, %v1105
    %v1107 = vrcp.pop %v1100
    %v1108 = vmul.f32 1.0, %v1107
    %v1109 = vmul.f32 %v1108, 2.0
    %v1110 = vsub.f32 %v1109, 1.0
    %v1112 = vrot.slane %v977, 7
    %v1114 = vmul.f32 %v1104, %v1112
    %v1115 = vmul.f32 %v1102, %v1110
    %v1116 = vadd.f32 %v1114, %v1115
    %v1117 = vtanh.pop %v1116
    %v1118 = vmul.f32 %v1106, %v1117
    %v1119 = vmul.f32 %v1118, %v703
    %v1120 = vpack.c.bf16 %v1119, %v1119
    %v1122 = vrot.slane %v1120, 2
    %1124 = vmatprep.subr.bf16.mxu0 %v385
    %1125 = vmatpush1.bf16.msra.mxu0 %v384
    %1126 = vmatprep.subr.bf16.mxu0 %v389
    %1127 = vmatpush1.bf16.msra.mxu0 %v388
    %1128 = vmatprep.subr.bf16.mxu0 %v393
    %1129 = vmatpush1.bf16.msra.mxu0 %v392
    %1130 = vmatprep.subr.bf16.mxu0 %v397
    %1131 = vmatpush1.bf16.msra.mxu0 %v396
    %1132 = vmatprep.subr.bf16.mxu0 %v401
    %1133 = vmatpush1.bf16.msra.mxu0 %v400
    %1134 = vmatprep.subr.bf16.mxu0 %v405
    %1135 = vmatpush1.bf16.msra.mxu0 %v404
    %1136 = vmatprep.subr.bf16.mxu0 %v409
    %1137 = vmatpush1.bf16.msra.mxu0 %v408
    %1138 = vmatprep.subr.bf16.mxu0 %v413
    %1139 = vmatpush1.bf16.msra.mxu0 %v412
    %1140 = vmatprep.subr.bf16.mxu0 0
    %1141 = vmatpush1.bf16.msra.mxu0 0
    %1142 = vmatprep.subr.bf16.mxu0 0
    %1143 = vmatpush1.bf16.msra.mxu0 0
    %1144 = vmatprep.subr.bf16.mxu0 0
    %1145 = vmatpush1.bf16.msra.mxu0 0
    %1146 = vmatprep.subr.bf16.mxu0 0
    %1147 = vmatpush1.bf16.msra.mxu0 0
    %1148 = vmatprep.subr.bf16.mxu0 0
    %1149 = vmatpush1.bf16.msra.mxu0 0
    %1150 = vmatprep.subr.bf16.mxu0 0
    %1151 = vmatpush1.bf16.msra.mxu0 0
    %1152 = vmatprep.subr.bf16.mxu0 0
    %1153 = vmatpush1.bf16.msra.mxu0 0
    %1154 = vmatprep.subr.bf16.mxu0 0
    %1155 = vmatpush1.bf16.msra.mxu0 0
    %1156 = vmatprep.mubr.bf16.mxu0 0
    %1157 = vmatmul.mubr.bf16.gmra.mrb[0].mxu0 %v1122
    %v1158 = vpop.f32.mrb[0].mxu0
    %v1159 = vadd.f32 0.0, %v1158
    %v1160 = vpop.f32.mrb[0].mxu0
    %v1161 = vadd.f32 0.0, %v1160
    %v1162 = vpop.f32.mrb[0].mxu0
    %v1163 = vpop.f32.mrb[0].mxu0
    %1164 = vdwg.mxu0
    %1165 = vmatprep.subr.bf16.mxu0 %v387
    %1166 = vmatpush1.bf16.msra.mxu0 %v386
    %1167 = vmatprep.subr.bf16.mxu0 %v391
    %1168 = vmatpush1.bf16.msra.mxu0 %v390
    %1169 = vmatprep.subr.bf16.mxu0 %v395
    %1170 = vmatpush1.bf16.msra.mxu0 %v394
    %1171 = vmatprep.subr.bf16.mxu0 %v399
    %1172 = vmatpush1.bf16.msra.mxu0 %v398
    %1173 = vmatprep.subr.bf16.mxu0 %v403
    %1174 = vmatpush1.bf16.msra.mxu0 %v402
    %1175 = vmatprep.subr.bf16.mxu0 %v407
    %1176 = vmatpush1.bf16.msra.mxu0 %v406
    %1177 = vmatprep.subr.bf16.mxu0 %v411
    %1178 = vmatpush1.bf16.msra.mxu0 %v410
    %1179 = vmatprep.subr.bf16.mxu0 %v415
    %1180 = vmatpush1.bf16.msra.mxu0 %v414
    %1181 = vmatprep.subr.bf16.mxu0 0
    %1182 = vmatpush1.bf16.msra.mxu0 0
    %1183 = vmatprep.subr.bf16.mxu0 0
    %1184 = vmatpush1.bf16.msra.mxu0 0
    %1185 = vmatprep.subr.bf16.mxu0 0
    %1186 = vmatpush1.bf16.msra.mxu0 0
    %1187 = vmatprep.subr.bf16.mxu0 0
    %1188 = vmatpush1.bf16.msra.mxu0 0
    %1189 = vmatprep.subr.bf16.mxu0 0
    %1190 = vmatpush1.bf16.msra.mxu0 0
    %1191 = vmatprep.subr.bf16.mxu0 0
    %1192 = vmatpush1.bf16.msra.mxu0 0
    %1193 = vmatprep.subr.bf16.mxu0 0
    %1194 = vmatpush1.bf16.msra.mxu0 0
    %1195 = vmatprep.subr.bf16.mxu0 0
    %1196 = vmatpush1.bf16.msra.mxu0 0
    %1197 = vmatprep.mubr.bf16.mxu0 0
    %1198 = vmatmul.mubr.bf16.gmra.mrb[0].mxu0 %v1122
    %v1199 = vpop.f32.mrb[0].mxu0
    %v1200 = vadd.f32 0.0, %v1199
    %v1201 = vpop.f32.mrb[0].mxu0
    %v1202 = vadd.f32 0.0, %v1201
    %v1203 = vpop.f32.mrb[0].mxu0
    %v1204 = vpop.f32.mrb[0].mxu0
    %1205 = vdwg.mxu0
    %v1210 = vrot.slane %v1159, 3
    %v1211 = vrot.slane %v1161, 3
    %v1212 = vrot.slane %v1200, 3
    %v1213 = vrot.slane %v1202, 3
    %v1218 = vadd.f32 %v206, %v1210
    %v1219 = vadd.f32 %v208, %v1211
    %v1220 = vadd.f32 %v247, %v1212
    %v1221 = vadd.f32 %v249, %v1213
    %v1222 = vxor.u32 %v1218, 2147483648
    %v1223 = vxor.u32 %v1219, 2147483648
    %v1224 = vxor.u32 %v1220, 2147483648
    %v1225 = vxor.u32 %v1221, 2147483648
    %v1226 = vmul.f32 %v1222, 1.442695
    %v1227 = vpow.pop %v1226
    %v1228 = vmul.f32 %v1223, 1.442695
    %v1229 = vpow.pop %v1228
    %v1230 = vmul.f32 %v1224, 1.442695
    %v1231 = vpow.pop %v1230
    %v1232 = vmul.f32 %v1225, 1.442695
    %v1233 = vpow.pop %v1232
    %v1234 = vadd.f32 %v1227, 1.0
    %v1235 = vadd.f32 %v1229, 1.0
    %v1236 = vadd.f32 %v1231, 1.0
    %v1237 = vadd.f32 %v1233, 1.0
    %v1238 = vrcp.pop %v1234
    %v1239 = vmul.f32 1.0, %v1238
    %v1240 = vrcp.pop %v1235
    %v1241 = vmul.f32 1.0, %v1240
    %v1242 = vrcp.pop %v1236
    %v1243 = vmul.f32 1.0, %v1242
    %v1244 = vrcp.pop %v1237
    %v1245 = vmul.f32 1.0, %v1244
    %v1246 = vmul.f32 %v1245, 2.0
    %v1247 = vsub.f32 %v1246, 1.0
    %v1249 = vrot.slane %v1116, 7
    %v1251 = vmul.f32 %v1241, %v1249
    %v1252 = vmul.f32 %v1239, %v1247
    %v1253 = vadd.f32 %v1251, %v1252
    %v1254 = vtanh.pop %v1253
    %v1255 = vmul.f32 %v1243, %v1254
    %v1256 = vmul.f32 %v1255, %v703
    %v1257 = vpack.c.bf16 %v1256, %v1256
    %v1259 = vshrl.u32 %v1257, 16
    %v1261 = vrot.slane %v1259, 2
    %1263 = vmatprep.subr.bf16.mxu0 %v385
    %1264 = vmatpush1.bf16.msra.mxu0 %v384
    %1265 = vmatprep.subr.bf16.mxu0 %v389
    %1266 = vmatpush1.bf16.msra.mxu0 %v388
    %1267 = vmatprep.subr.bf16.mxu0 %v393
    %1268 = vmatpush1.bf16.msra.mxu0 %v392
    %1269 = vmatprep.subr.bf16.mxu0 %v397
    %1270 = vmatpush1.bf16.msra.mxu0 %v396
    %1271 = vmatprep.subr.bf16.mxu0 %v401
    %1272 = vmatpush1.bf16.msra.mxu0 %v400
    %1273 = vmatprep.subr.bf16.mxu0 %v405
    %1274 = vmatpush1.bf16.msra.mxu0 %v404
    %1275 = vmatprep.subr.bf16.mxu0 %v409
    %1276 = vmatpush1.bf16.msra.mxu0 %v408
    %1277 = vmatprep.subr.bf16.mxu0 %v413
    %1278 = vmatpush1.bf16.msra.mxu0 %v412
    %1279 = vmatprep.subr.bf16.mxu0 0
    %1280 = vmatpush1.bf16.msra.mxu0 0
    %1281 = vmatprep.subr.bf16.mxu0 0
    %1282 = vmatpush1.bf16.msra.mxu0 0
    %1283 = vmatprep.subr.bf16.mxu0 0
    %1284 = vmatpush1.bf16.msra.mxu0 0
    %1285 = vmatprep.subr.bf16.mxu0 0
    %1286 = vmatpush1.bf16.msra.mxu0 0
    %1287 = vmatprep.subr.bf16.mxu0 0
    %1288 = vmatpush1.bf16.msra.mxu0 0
    %1289 = vmatprep.subr.bf16.mxu0 0
    %1290 = vmatpush1.bf16.msra.mxu0 0
    %1291 = vmatprep.subr.bf16.mxu0 0
    %1292 = vmatpush1.bf16.msra.mxu0 0
    %1293 = vmatprep.subr.bf16.mxu0 0
    %1294 = vmatpush1.bf16.msra.mxu0 0
    %1295 = vmatprep.mubr.bf16.mxu0 0
    %1296 = vmatmul.mubr.bf16.gmra.mrb[0].mxu0 %v1261
    %v1297 = vpop.f32.mrb[0].mxu0
    %v1298 = vadd.f32 0.0, %v1297
    %v1299 = vpop.f32.mrb[0].mxu0
    %v1300 = vadd.f32 0.0, %v1299
    %v1301 = vpop.f32.mrb[0].mxu0
    %v1302 = vpop.f32.mrb[0].mxu0
    %1303 = vdwg.mxu0
    %1304 = vmatprep.subr.bf16.mxu0 %v387
    %1305 = vmatpush1.bf16.msra.mxu0 %v386
    %1306 = vmatprep.subr.bf16.mxu0 %v391
    %1307 = vmatpush1.bf16.msra.mxu0 %v390
    %1308 = vmatprep.subr.bf16.mxu0 %v395
    %1309 = vmatpush1.bf16.msra.mxu0 %v394
    %1310 = vmatprep.subr.bf16.mxu0 %v399
    %1311 = vmatpush1.bf16.msra.mxu0 %v398
    %1312 = vmatprep.subr.bf16.mxu0 %v403
    %1313 = vmatpush1.bf16.msra.mxu0 %v402
    %1314 = vmatprep.subr.bf16.mxu0 %v407
    %1315 = vmatpush1.bf16.msra.mxu0 %v406
    %1316 = vmatprep.subr.bf16.mxu0 %v411
    %1317 = vmatpush1.bf16.msra.mxu0 %v410
    %1318 = vmatprep.subr.bf16.mxu0 %v415
    %1319 = vmatpush1.bf16.msra.mxu0 %v414
    %1320 = vmatprep.subr.bf16.mxu0 0
    %1321 = vmatpush1.bf16.msra.mxu0 0
    %1322 = vmatprep.subr.bf16.mxu0 0
    %1323 = vmatpush1.bf16.msra.mxu0 0
    %1324 = vmatprep.subr.bf16.mxu0 0
    %1325 = vmatpush1.bf16.msra.mxu0 0
    %1326 = vmatprep.subr.bf16.mxu0 0
    %1327 = vmatpush1.bf16.msra.mxu0 0
    %1328 = vmatprep.subr.bf16.mxu0 0
    %1329 = vmatpush1.bf16.msra.mxu0 0
    %1330 = vmatprep.subr.bf16.mxu0 0
    %1331 = vmatpush1.bf16.msra.mxu0 0
    %1332 = vmatprep.subr.bf16.mxu0 0
    %1333 = vmatpush1.bf16.msra.mxu0 0
    %1334 = vmatprep.subr.bf16.mxu0 0
    %1335 = vmatpush1.bf16.msra.mxu0 0
    %1336 = vmatprep.mubr.bf16.mxu0 0
    %1337 = vmatmul.mubr.bf16.gmra.mrb[0].mxu0 %v1261
    %v1338 = vpop.f32.mrb[0].mxu0
    %v1339 = vadd.f32 0.0, %v1338
    %v1340 = vpop.f32.mrb[0].mxu0
    %v1341 = vadd.f32 0.0, %v1340
    %v1342 = vpop.f32.mrb[0].mxu0
    %v1343 = vpop.f32.mrb[0].mxu0
    %1344 = vdwg.mxu0
    %v1349 = vrot.slane %v1298, 2
    %v1350 = vrot.slane %v1300, 2
    %v1351 = vrot.slane %v1339, 2
    %v1352 = vrot.slane %v1341, 2
    %v1357 = vadd.f32 %v206, %v1349
    %v1358 = vadd.f32 %v208, %v1350
    %v1359 = vadd.f32 %v247, %v1351
    %v1360 = vadd.f32 %v249, %v1352
    %v1361 = vxor.u32 %v1357, 2147483648
    %v1362 = vxor.u32 %v1358, 2147483648
    %v1363 = vxor.u32 %v1359, 2147483648
    %v1364 = vxor.u32 %v1360, 2147483648
    %v1365 = vmul.f32 %v1361, 1.442695
    %v1366 = vpow.pop %v1365
    %v1367 = vmul.f32 %v1362, 1.442695
    %v1368 = vpow.pop %v1367
    %v1369 = vmul.f32 %v1363, 1.442695
    %v1370 = vpow.pop %v1369
    %v1371 = vmul.f32 %v1364, 1.442695
    %v1372 = vpow.pop %v1371
    %v1373 = vadd.f32 %v1366, 1.0
    %v1374 = vadd.f32 %v1368, 1.0
    %v1375 = vadd.f32 %v1370, 1.0
    %v1376 = vadd.f32 %v1372, 1.0
    %v1377 = vrcp.pop %v1373
    %v1378 = vmul.f32 1.0, %v1377
    %v1379 = vrcp.pop %v1374
    %v1380 = vmul.f32 1.0, %v1379
    %v1381 = vrcp.pop %v1375
    %v1382 = vmul.f32 1.0, %v1381
    %v1383 = vrcp.pop %v1376
    %v1384 = vmul.f32 1.0, %v1383
    %v1385 = vmul.f32 %v1384, 2.0
    %v1386 = vsub.f32 %v1385, 1.0
    %v1388 = vrot.slane %v1253, 7
    %v1390 = vmul.f32 %v1380, %v1388
    %v1391 = vmul.f32 %v1378, %v1386
    %v1392 = vadd.f32 %v1390, %v1391
    %v1393 = vtanh.pop %v1392
    %v1394 = vmul.f32 %v1382, %v1393
    %v1395 = vmul.f32 %v1394, %v703
    %v1396 = vpack.c.bf16 %v1395, %v1395
    %v1398 = vrot.slane %v1396, 3
    %1400 = vmatprep.subr.bf16.mxu0 %v385
    %1401 = vmatpush1.bf16.msra.mxu0 %v384
    %1402 = vmatprep.subr.bf16.mxu0 %v389
    %1403 = vmatpush1.bf16.msra.mxu0 %v388
    %1404 = vmatprep.subr.bf16.mxu0 %v393
    %1405 = vmatpush1.bf16.msra.mxu0 %v392
    %1406 = vmatprep.subr.bf16.mxu0 %v397
    %1407 = vmatpush1.bf16.msra.mxu0 %v396
    %1408 = vmatprep.subr.bf16.mxu0 %v401
    %1409 = vmatpush1.bf16.msra.mxu0 %v400
    %1410 = vmatprep.subr.bf16.mxu0 %v405
    %1411 = vmatpush1.bf16.msra.mxu0 %v404
    %1412 = vmatprep.subr.bf16.mxu0 %v409
    %1413 = vmatpush1.bf16.msra.mxu0 %v408
    %1414 = vmatprep.subr.bf16.mxu0 %v413
    %1415 = vmatpush1.bf16.msra.mxu0 %v412
    %1416 = vmatprep.subr.bf16.mxu0 0
    %1417 = vmatpush1.bf16.msra.mxu0 0
    %1418 = vmatprep.subr.bf16.mxu0 0
    %1419 = vmatpush1.bf16.msra.mxu0 0
    %1420 = vmatprep.subr.bf16.mxu0 0
    %1421 = vmatpush1.bf16.msra.mxu0 0
    %1422 = vmatprep.subr.bf16.mxu0 0
    %1423 = vmatpush1.bf16.msra.mxu0 0
    %1424 = vmatprep.subr.bf16.mxu0 0
    %1425 = vmatpush1.bf16.msra.mxu0 0
    %1426 = vmatprep.subr.bf16.mxu0 0
    %1427 = vmatpush1.bf16.msra.mxu0 0
    %1428 = vmatprep.subr.bf16.mxu0 0
    %1429 = vmatpush1.bf16.msra.mxu0 0
    %1430 = vmatprep.subr.bf16.mxu0 0
    %1431 = vmatpush1.bf16.msra.mxu0 0
    %1432 = vmatprep.mubr.bf16.mxu0 0
    %1433 = vmatmul.mubr.bf16.gmra.mrb[0].mxu0 %v1398
    %v1434 = vpop.f32.mrb[0].mxu0
    %v1435 = vadd.f32 0.0, %v1434
    %v1436 = vpop.f32.mrb[0].mxu0
    %v1437 = vadd.f32 0.0, %v1436
    %v1438 = vpop.f32.mrb[0].mxu0
    %v1439 = vpop.f32.mrb[0].mxu0
    %1440 = vdwg.mxu0
    %1441 = vmatprep.subr.bf16.mxu0 %v387
    %1442 = vmatpush1.bf16.msra.mxu0 %v386
    %1443 = vmatprep.subr.bf16.mxu0 %v391
    %1444 = vmatpush1.bf16.msra.mxu0 %v390
    %1445 = vmatprep.subr.bf16.mxu0 %v395
    %1446 = vmatpush1.bf16.msra.mxu0 %v394
    %1447 = vmatprep.subr.bf16.mxu0 %v399
    %1448 = vmatpush1.bf16.msra.mxu0 %v398
    %1449 = vmatprep.subr.bf16.mxu0 %v403
    %1450 = vmatpush1.bf16.msra.mxu0 %v402
    %1451 = vmatprep.subr.bf16.mxu0 %v407
    %1452 = vmatpush1.bf16.msra.mxu0 %v406
    %1453 = vmatprep.subr.bf16.mxu0 %v411
    %1454 = vmatpush1.bf16.msra.mxu0 %v410
    %1455 = vmatprep.subr.bf16.mxu0 %v415
    %1456 = vmatpush1.bf16.msra.mxu0 %v414
    %1457 = vmatprep.subr.bf16.mxu0 0
    %1458 = vmatpush1.bf16.msra.mxu0 0
    %1459 = vmatprep.subr.bf16.mxu0 0
    %1460 = vmatpush1.bf16.msra.mxu0 0
    %1461 = vmatprep.subr.bf16.mxu0 0
    %1462 = vmatpush1.bf16.msra.mxu0 0
    %1463 = vmatprep.subr.bf16.mxu0 0
    %1464 = vmatpush1.bf16.msra.mxu0 0
    %1465 = vmatprep.subr.bf16.mxu0 0
    %1466 = vmatpush1.bf16.msra.mxu0 0
    %1467 = vmatprep.subr.bf16.mxu0 0
    %1468 = vmatpush1.bf16.msra.mxu0 0
    %1469 = vmatprep.subr.bf16.mxu0 0
    %1470 = vmatpush1.bf16.msra.mxu0 0
    %1471 = vmatprep.subr.bf16.mxu0 0
    %1472 = vmatpush1.bf16.msra.mxu0 0
    %1473 = vmatprep.mubr.bf16.mxu0 0
    %1474 = vmatmul.mubr.bf16.gmra.mrb[0].mxu0 %v1398
    %v1475 = vpop.f32.mrb[0].mxu0
    %v1476 = vadd.f32 0.0, %v1475
    %v1477 = vpop.f32.mrb[0].mxu0
    %v1478 = vadd.f32 0.0, %v1477
    %v1479 = vpop.f32.mrb[0].mxu0
    %v1480 = vpop.f32.mrb[0].mxu0
    %1481 = vdwg.mxu0
    %v1486 = vrot.slane %v1435, 1
    %v1487 = vrot.slane %v1437, 1
    %v1488 = vrot.slane %v1476, 1
    %v1489 = vrot.slane %v1478, 1
    %v1494 = vadd.f32 %v206, %v1486
    %v1495 = vadd.f32 %v208, %v1487
    %v1496 = vadd.f32 %v247, %v1488
    %v1497 = vadd.f32 %v249, %v1489
    %v1498 = vxor.u32 %v1494, 2147483648
    %v1499 = vxor.u32 %v1495, 2147483648
    %v1500 = vxor.u32 %v1496, 2147483648
    %v1501 = vxor.u32 %v1497, 2147483648
    %v1502 = vmul.f32 %v1498, 1.442695
    %v1503 = vpow.pop %v1502
    %v1504 = vmul.f32 %v1499, 1.442695
    %v1505 = vpow.pop %v1504
    %v1506 = vmul.f32 %v1500, 1.442695
    %v1507 = vpow.pop %v1506
    %v1508 = vmul.f32 %v1501, 1.442695
    %v1509 = vpow.pop %v1508
    %v1510 = vadd.f32 %v1503, 1.0
    %v1511 = vadd.f32 %v1505, 1.0
    %v1512 = vadd.f32 %v1507, 1.0
    %v1513 = vadd.f32 %v1509, 1.0
    %v1514 = vrcp.pop %v1510
    %v1515 = vmul.f32 1.0, %v1514
    %v1516 = vrcp.pop %v1511
    %v1517 = vmul.f32 1.0, %v1516
    %v1518 = vrcp.pop %v1512
    %v1519 = vmul.f32 1.0, %v1518
    %v1520 = vrcp.pop %v1513
    %v1521 = vmul.f32 1.0, %v1520
    %v1522 = vmul.f32 %v1521, 2.0
    %v1523 = vsub.f32 %v1522, 1.0
    %v1525 = vrot.slane %v1392, 7
    %v1527 = vmul.f32 %v1517, %v1525
    %v1528 = vmul.f32 %v1515, %v1523
    %v1529 = vadd.f32 %v1527, %v1528
    %v1530 = vtanh.pop %v1529
    %v1531 = vmul.f32 %v1519, %v1530
    %vm1532 = vcmask 1040384
    %v1533 = vsel %vm1532, %v564, %v698
    %vm1534 = vcmask 1041408
    %v1535 = vsel %vm1534, %v1533, %v842
    %vm1536 = vcmask 1042432
    %v1537 = vsel %vm1536, %v1535, %v979
    %vm1538 = vcmask 1043456
    %v1539 = vsel %vm1538, %v1537, %v1118
    %vm1540 = vcmask 1044480
    %v1541 = vsel %vm1540, %v1539, %v1255
    %vm1542 = vcmask 1045504
    %v1543 = vsel %vm1542, %v1541, %v1394
    %vm1544 = vcmask 1046528
    %v1545 = vsel %vm1544, %v1543, %v1531
    %1546 = vst [vmem:[#allocation10] sm:$0xff] %v1545
    %v1547 = vpack.c.bf16 %v1545, %v1545
    %v1548 = vld [vmem:[#allocation8] sm:$0xf]
    %v1549 = vld [vmem:[#allocation8 + $0x4] sm:$0xf]
    %v1550 = vld [vmem:[#allocation8 + $0x8] sm:$0xf]
    %v1551 = vld [vmem:[#allocation8 + $0xc] sm:$0xf]
    %v1552 = vld [vmem:[#allocation8 + $0x10] sm:$0xf]
    %v1553 = vld [vmem:[#allocation8 + $0x14] sm:$0xf]
    %v1554 = vld [vmem:[#allocation8 + $0x18] sm:$0xf]
    %v1555 = vld [vmem:[#allocation8 + $0x1c] sm:$0xf]
    %v1556 = vld [vmem:[#allocation8 + $0x20] sm:$0xf]
    %v1557 = vld [vmem:[#allocation8 + $0x24] sm:$0xf]
    %v1558 = vld [vmem:[#allocation8 + $0x28] sm:$0xf]
    %v1559 = vld [vmem:[#allocation8 + $0x2c] sm:$0xf]
    %v1560 = vld [vmem:[#allocation8 + $0x30] sm:$0xf]
    %v1561 = vld [vmem:[#allocation8 + $0x34] sm:$0xf]
    %v1562 = vld [vmem:[#allocation8 + $0x38] sm:$0xf]
    %v1563 = vld [vmem:[#allocation8 + $0x3c] sm:$0xf]
    %v1564 = vld [vmem:[%s7] sm:$0x1]
    %v1566 = vlaneseq
    %v1567 = vshrl.u32 %v1566, 7
    %v1568 = vsub.s32 0, %v1567
    %v1569 = vrot.slane %v1564, %v1568
    %v1587 = vunpack.c.l.b16 %v1548
    %v1588 = vunpack.c.l.b16 %v1549
    %v1589 = vunpack.c.l.b16 %v1550
    %v1590 = vunpack.c.l.b16 %v1551
    %v1591 = vunpack.c.l.b16 %v1552
    %v1592 = vunpack.c.l.b16 %v1553
    %v1593 = vunpack.c.l.b16 %v1554
    %v1594 = vunpack.c.l.b16 %v1555
    %v1595 = vunpack.c.l.b16 %v1556
    %v1596 = vunpack.c.l.b16 %v1557
    %v1597 = vunpack.c.l.b16 %v1558
    %v1598 = vunpack.c.l.b16 %v1559
    %v1599 = vunpack.c.l.b16 %v1560
    %v1600 = vunpack.c.l.b16 %v1561
    %v1601 = vunpack.c.l.b16 %v1562
    %v1602 = vunpack.c.l.b16 %v1563
    %v1603 = vpack.c.b16 %v1588, %v1587
    %v1604 = vpack.c.b16 %v1590, %v1589
    %v1605 = vpack.c.b16 %v1592, %v1591
    %v1606 = vpack.c.b16 %v1594, %v1593
    %v1607 = vpack.c.b16 %v1596, %v1595
    %v1608 = vpack.c.b16 %v1598, %v1597
    %v1609 = vpack.c.b16 %v1600, %v1599
    %v1610 = vpack.c.b16 %v1602, %v1601
    %1619 = vmatprep.subr.bf16.mxu0 0
    %1620 = vmatpush1.bf16.msra.mxu0 %v1603
    %1621 = vmatprep.subr.bf16.mxu0 0
    %1622 = vmatpush1.bf16.msra.mxu0 %v1604
    %1623 = vmatprep.subr.bf16.mxu0 0
    %1624 = vmatpush1.bf16.msra.mxu0 %v1605
    %1625 = vmatprep.subr.bf16.mxu0 0
    %1626 = vmatpush1.bf16.msra.mxu0 %v1606
    %1627 = vmatprep.subr.bf16.mxu0 0
    %1628 = vmatpush1.bf16.msra.mxu0 %v1607
    %1629 = vmatprep.subr.bf16.mxu0 0
    %1630 = vmatpush1.bf16.msra.mxu0 %v1608
    %1631 = vmatprep.subr.bf16.mxu0 0
    %1632 = vmatpush1.bf16.msra.mxu0 %v1609
    %1633 = vmatprep.subr.bf16.mxu0 0
    %1634 = vmatpush1.bf16.msra.mxu0 %v1610
    %1635 = vmatprep.subr.bf16.mxu0 0
    %1636 = vmatpush1.bf16.msra.mxu0 0
    %1637 = vmatprep.subr.bf16.mxu0 0
    %1638 = vmatpush1.bf16.msra.mxu0 0
    %1639 = vmatprep.subr.bf16.mxu0 0
    %1640 = vmatpush1.bf16.msra.mxu0 0
    %1641 = vmatprep.subr.bf16.mxu0 0
    %1642 = vmatpush1.bf16.msra.mxu0 0
    %1643 = vmatprep.subr.bf16.mxu0 0
    %1644 = vmatpush1.bf16.msra.mxu0 0
    %1645 = vmatprep.subr.bf16.mxu0 0
    %1646 = vmatpush1.bf16.msra.mxu0 0
    %1647 = vmatprep.subr.bf16.mxu0 0
    %1648 = vmatpush1.bf16.msra.mxu0 0
    %1649 = vmatprep.subr.bf16.mxu0 0
    %1650 = vmatpush1.bf16.msra.mxu0 0
    %1651 = vmatprep.mubr.bf16.mxu0 0
    %1652 = vmatmul.mubr.bf16.gmra.mrb[0].mxu0 %v1547
    %v1653 = vpop.f32.mrb[0].mxu0
    %v1654 = vadd.f32 %v1569, %v1653
    %v1655 = vpop.f32.mrb[0].mxu0
    %v1656 = vpop.f32.mrb[0].mxu0
    %v1657 = vpop.f32.mrb[0].mxu0
    %1658 = vdwg.mxu0
    %1659 = vst [vmem:[#allocation11] sm:$0xff] %v1654
    // Predicated region
    $region50: #{tpu_custom_call.1} parent=1 // pred_check
      _
    $region51: #{tpu_custom_call.1} parent=1 // pred_check_branch
      %1661 = sbr.rel (0) target = $region53
    $region52: #{tpu_custom_call.1} parent=1 // pred_region
      %s1663 = ssub.s32 128, 128
      %1664 = vsyncadd [#allocation4], %s1663
      %s1666 = sshll.u32 [#allocation10], 4
      %s1667 = int_to_ptr.vmem [resolvable:$true] %s1666
      %1669 = dma.vmem_to_hbm [thread:$0]  %s1667, 128, %s8, [#allocation4]
    $region53: #{tpu_custom_call.1} parent=1 // pred_fallthru
      _
    // Predicated region
    $region54: #{tpu_custom_call.1} parent=1 // pred_check
      _
    $region55: #{tpu_custom_call.1} parent=1 // pred_check_branch
      %1671 = sbr.rel (0) target = $region57
    $region56: #{tpu_custom_call.1} parent=1 // pred_region
      %s1673 = ssub.s32 128, 128
      %1674 = vsyncadd [#allocation12], %s1673
      %s1676 = sshll.u32 [#allocation11], 4
      %s1677 = int_to_ptr.vmem [resolvable:$true] %s1676
      %1679 = dma.vmem_to_hbm [thread:$0]  %s1677, 128, %s9, [#allocation12]
    $region57: #{tpu_custom_call.1} parent=1 // pred_fallthru
      _
    // Predicated region
    $region58: #{tpu_custom_call.1} parent=1 // pred_check
      _
    $region59: #{tpu_custom_call.1} parent=1 // pred_check_branch
      %1681 = sbr.rel (0) target = $region61
    $region60: #{tpu_custom_call.1} parent=1 // pred_region
      %1682 = dma.done [#allocation4], 128
    $region61: #{tpu_custom_call.1} parent=1 // pred_fallthru
      _
    // Predicated region
    $region62: #{tpu_custom_call.1} parent=1 // pred_check
      _
    $region63: #{tpu_custom_call.1} parent=1 // pred_check_branch
      %1684 = sbr.rel (0) target = $region65
    $region64: #{tpu_custom_call.1} parent=1 // pred_region
      %1685 = dma.done [#allocation12], 128
    $region65: #{tpu_custom_call.1} parent=1 // pred_fallthru
      _
    %1686 = vsyncpa [#allocation3], 1
    %1687 = vsyncpa [#allocation6], 1
    %1688 = vsyncpa [#allocation9], 1
    %1689 = vsyncpa [#allocation4], 1
    %1690 = vsyncpa [#allocation12], 1

</llo_original>
